<compile_context>
chip_gen: v6e
topology: v6e:2x2x1
jax: 0.10.0
libtpu: 0.0.40
codegen_flags: <defaults>
</compile_context>

<pallas_src>
import math

import jax
import jax.numpy as jnp
import numpy as np
from jax.experimental import pallas as pl
from jax.experimental.pallas import tpu as pltpu


# ---------------------------------------------------------------------------
# Fused GRU-stack + fc(relu(.)) kernel builder
# ---------------------------------------------------------------------------
def _make_gru_net_kernel(T, BP, H, OP, n_layers):
    """Build the fused kernel.

    Ref layout (all whole-array VMEM blocks, grid=()):
      inputs : x_flat (T*BP, D0)            time-major, batch padded to BP
               h0     (L, BP, H)
               per layer l: w_ih (D_l, 3H), w_hh (H, 3H),
                            b_gi (1, 3H)    = b_ih + [b_hr, b_hz, 0]
                            b_hn (1, H)
               fc_w (H, OP), fc_b (1, OP)   lane-padded to OP (mult of 128)
      outputs: out (BP, OP), h_out (L, BP, H)
      scratch: seq (T*BP, H)                inter-layer sequence activations
    """

    def kernel(*refs):
        x_ref = refs[0]
        h0_ref = refs[1]
        layer_refs = refs[2:2 + 4 * n_layers]
        fc_w_ref = refs[2 + 4 * n_layers]
        fc_b_ref = refs[3 + 4 * n_layers]
        out_ref = refs[4 + 4 * n_layers]
        h_out_ref = refs[5 + 4 * n_layers]
        seq_ref = refs[6 + 4 * n_layers]

        h_last = None
        for l in range(n_layers):
            w_ih_ref, w_hh_ref, b_gi_ref, b_hn_ref = layer_refs[4 * l:4 * l + 4]

            # Layer input as one (T*BP, D_l) slab (VMEM scratch for l > 0).
            x_in = x_ref[...] if l == 0 else seq_ref[...]

            # Hoisted, time-independent input projection: ONE MXU matmul for
            # all three gates over the whole sequence. b_ih and the foldable
            # hh biases (r, z) are pre-merged into b_gi by the wrapper.
            gi = (jnp.dot(x_in, w_ih_ref[...],
                          preferred_element_type=jnp.float32)
                  + b_gi_ref[...])                        # (T*BP, 3H)

            w_hh = w_hh_ref[...]                          # (H, 3H)
            # Hoist the b_hn broadcast out of the unrolled loop.
            b_hn = jnp.broadcast_to(b_hn_ref[...], (BP, H))

            h = h0_ref[l].astype(jnp.float32)             # (BP, H)
            is_last_layer = (l == n_layers - 1)

            # Fully unrolled time recurrence; one fused W_hh matmul per step.
            for t in range(T):
                lo = t * BP                               # 8-aligned, static
                gh = jnp.dot(h, w_hh,
                             preferred_element_type=jnp.float32)  # (BP, 3H)
                gi_t = gi[lo:lo + BP]                     # (BP, 3H)
                r = jax.nn.sigmoid(gi_t[:, :H] + gh[:, :H])
                z = jax.nn.sigmoid(gi_t[:, H:2 * H] + gh[:, H:2 * H])
                n = jnp.tanh(gi_t[:, 2 * H:] + r * (gh[:, 2 * H:] + b_hn))
                h = (1.0 - z) * n + z * h
                if not is_last_layer:
                    # 8-aligned static sublane write: next layer's hoisted
                    # projection consumes the whole sequence in one matmul.
                    seq_ref[lo:lo + BP, :] = h

            # Final-hidden write: exactly once per layer.
            h_out_ref[l] = h.astype(h_out_ref.dtype)
            h_last = h

        # fc(relu(last hidden of top layer)) — lane-dense (OP = mult of 128)
        # so the epilogue store is an unmasked full-lane vst.
        a = jnp.maximum(h_last, 0.0)
        out_ref[...] = (jnp.dot(a, fc_w_ref[...],
                                preferred_element_type=jnp.float32)
                        + fc_b_ref[...]).astype(out_ref.dtype)

    return kernel


# ---------------------------------------------------------------------------
# GRUNet forward (wrapper: layout plumbing + single pallas_call)
# ---------------------------------------------------------------------------
def gru_net_forward(x, h0, params):
    """x: (B, T, D), h0: (L, B, H) -> (out (B, O), h (L, B, H))."""
    B, T, D = x.shape
    L = len(params["layers"])
    H = h0.shape[-1]
    O = params["fc_w"].shape[-1]

    BP = ((B + 7) // 8) * 8          # sublane-aligned batch
    OP = ((O + 127) // 128) * 128    # lane-dense fc output

    # time-major, batch padded, flattened — hoisted projection is one matmul.
    x_tm = jnp.transpose(x, (1, 0, 2))                      # (T, B, D)
    x_tm = jnp.pad(x_tm, ((0, 0), (0, BP - B), (0, 0)))     # (T, BP, D)
    x_flat = x_tm.reshape(T * BP, D)
    h0_p = jnp.pad(h0, ((0, 0), (0, BP - B), (0, 0)))       # (L, BP, H)

    layer_args = []
    flops = 0
    transcendentals = 0
    for (w_ih_t, w_hh_t, b_ih, b_hh) in params["layers"]:
        d_in = w_ih_t.shape[0]
        # Fold b_ih + (b_hr, b_hz) into one hoisted bias; b_hn stays separate
        # because it sits under the r* multiply.
        b_gi = b_ih + jnp.concatenate(
            [b_hh[:, :2 * H], jnp.zeros((1, H), b_hh.dtype)], axis=1)
        b_hn = b_hh[:, 2 * H:]
        layer_args += [w_ih_t, w_hh_t, b_gi, b_hn]
        flops += 2 * T * BP * d_in * 3 * H        # hoisted input projection
        flops += 2 * T * BP * H * 3 * H           # recurrent matmuls
        transcendentals += 3 * T * BP * H         # 2x sigmoid + 1x tanh
    fc_w_p = jnp.pad(params["fc_w"], ((0, 0), (0, OP - O)))
    fc_b_p = jnp.pad(params["fc_b"], ((0, 0), (0, OP - O)))
    flops += 2 * BP * H * OP

    kernel = _make_gru_net_kernel(T, BP, H, OP, L)
    n_in = 2 + 4 * L + 2
    vmem_spec = pl.BlockSpec(memory_space=pltpu.MemorySpace.VMEM)

    bytes_accessed = 4 * (
        x_flat.size + h0_p.size
        + sum(int(np.prod(a.shape)) for a in layer_args)
        + fc_w_p.size + fc_b_p.size + BP * OP + L * BP * H)

    out_pad, h_out_pad = pl.pallas_call(
        kernel,
        out_shape=(
            jax.ShapeDtypeStruct((BP, OP), x.dtype),
            jax.ShapeDtypeStruct((L, BP, H), x.dtype),
        ),
        in_specs=[vmem_spec] * n_in,
        out_specs=(vmem_spec, vmem_spec),
        scratch_shapes=[pltpu.VMEM((T * BP, H), jnp.float32)],
        cost_estimate=pl.CostEstimate(
            flops=int(flops),
            transcendentals=int(transcendentals),
            bytes_accessed=int(bytes_accessed)),
    )(x_flat, h0_p, *layer_args, fc_w_p, fc_b_p)

    return out_pad[:B, :O], h_out_pad[:, :B, :]


# ---------------------------------------------------------------------------
# deterministic parameter init (PyTorch-style uniform(-1/sqrt(H), 1/sqrt(H)))
# ---------------------------------------------------------------------------
def init_params(key, input_dim, hidden_dim, output_dim, n_layers):
    k = 1.0 / math.sqrt(hidden_dim)
    layers = []
    for l in range(n_layers):
        in_dim = input_dim if l == 0 else hidden_dim
        key, k1, k2, k3, k4 = jax.random.split(key, 5)
        # stored pre-transposed: (in_dim, 3H), (H, 3H); biases as (1, 3H)
        w_ih_t = jax.random.uniform(k1, (in_dim, 3 * hidden_dim), jnp.float32, -k, k)
        w_hh_t = jax.random.uniform(k2, (hidden_dim, 3 * hidden_dim), jnp.float32, -k, k)
        b_ih = jax.random.uniform(k3, (1, 3 * hidden_dim), jnp.float32, -k, k)
        b_hh = jax.random.uniform(k4, (1, 3 * hidden_dim), jnp.float32, -k, k)
        layers.append((w_ih_t, w_hh_t, b_ih, b_hh))
    key, k5, k6 = jax.random.split(key, 3)
    kf = 1.0 / math.sqrt(hidden_dim)
    fc_w = jax.random.uniform(k5, (hidden_dim, output_dim), jnp.float32, -kf, kf)
    fc_b = jax.random.uniform(k6, (1, output_dim), jnp.float32, -kf, kf)
    return {"layers": layers, "fc_w": fc_w, "fc_b": fc_b}


# ---------------------------------------------------------------------------
# pure-JAX reference (for correctness sanity check)
# ---------------------------------------------------------------------------
def gru_net_reference(x, h0, params):
    B, T, D = x.shape
    n_layers = len(params["layers"])
    layer_in = x
    h_finals = []
    for l in range(n_layers):
        w_ih_t, w_hh_t, b_ih, b_hh = params["layers"][l]
        H = w_hh_t.shape[0]
        h = h0[l]
        outs = []
        for t in range(T):
            x_t = layer_in[:, t]
            gi = x_t @ w_ih_t + b_ih
            gh = h @ w_hh_t + b_hh
            i_r, i_z, i_n = gi[:, :H], gi[:, H:2 * H], gi[:, 2 * H:]
            h_r, h_z, h_n = gh[:, :H], gh[:, H:2 * H], gh[:, 2 * H:]
            r = jax.nn.sigmoid(i_r + h_r)
            z = jax.nn.sigmoid(i_z + h_z)
            n = jnp.tanh(i_n + r * h_n)
            h = (1.0 - z) * n + z * h
            outs.append(h)
        layer_in = jnp.stack(outs, axis=1)
        h_finals.append(h)
    h_out = jnp.stack(h_finals, 0)
    last = jnp.maximum(layer_in[:, -1], 0.0)
    out = last @ params["fc_w"] + params["fc_b"]
    return out, h_out


if __name__ == "__main__":
    B, T, D, H, O, L = 2, 8, 16, 32, 4, 2

    key = jax.random.PRNGKey(0)
    kp, kx, kh = jax.random.split(key, 3)
    params = init_params(kp, D, H, O, L)
    x = jax.random.normal(kx, (B, T, D), jnp.float32)
    h0 = jnp.zeros((L, B, H), jnp.float32)   # GRUNet.init_hidden

    out, h = jax.block_until_ready(gru_net_forward(x, h0, params))

    out_ref, h_ref = gru_net_reference(x, h0, params)
    np.testing.assert_allclose(np.asarray(out), np.asarray(out_ref), rtol=1e-5, atol=1e-5)
    np.testing.assert_allclose(np.asarray(h), np.asarray(h_ref), rtol=1e-5, atol=1e-5)

    print("KERNEL_OK")
</pallas_src>

<mosaic_0001>
module attributes {stable_mosaic.version = 11 : i64} {
  func.func @kernel(%arg0: memref<64x16xf32, #tpu.memory_space<vmem>>, %arg1: memref<2x8x32xf32, #tpu.memory_space<vmem>>, %arg2: memref<16x96xf32, #tpu.memory_space<vmem>>, %arg3: memref<32x96xf32, #tpu.memory_space<vmem>>, %arg4: memref<1x96xf32, #tpu.memory_space<vmem>>, %arg5: memref<1x32xf32, #tpu.memory_space<vmem>>, %arg6: memref<32x96xf32, #tpu.memory_space<vmem>>, %arg7: memref<32x96xf32, #tpu.memory_space<vmem>>, %arg8: memref<1x96xf32, #tpu.memory_space<vmem>>, %arg9: memref<1x32xf32, #tpu.memory_space<vmem>>, %arg10: memref<32x128xf32, #tpu.memory_space<vmem>>, %arg11: memref<1x128xf32, #tpu.memory_space<vmem>>, %arg12: memref<8x128xf32, #tpu.memory_space<vmem>>, %arg13: memref<2x8x32xf32, #tpu.memory_space<vmem>>, %arg14: memref<64x32xf32, #tpu.memory_space<vmem>>) attributes {dimension_semantics = [], scalar_prefetch = 0 : i64, scratch_operands = 1 : i64, tpu.core_type = #tpu.core_type<tc>} {
    %c0 = arith.constant 0 : index
    %c0_0 = arith.constant 0 : index
    %0 = vector.load %arg0[%c0, %c0_0] : memref<64x16xf32, #tpu.memory_space<vmem>>, vector<64x16xf32>
    %c0_1 = arith.constant 0 : index
    %c0_2 = arith.constant 0 : index
    %1 = vector.load %arg2[%c0_1, %c0_2] : memref<16x96xf32, #tpu.memory_space<vmem>>, vector<16x96xf32>
    %cst = arith.constant dense<0.000000e+00> : vector<64x96xf32>
    %2 = tpu.matmul %0, %1, %cst {dimension_numbers = #tpu.dot_dimension_numbers<[1], [0], [0], [1], [0, 0, 1, 1], [], []>} : vector<64x16xf32>, vector<16x96xf32>, vector<64x96xf32> -> vector<64x96xf32>
    %c0_3 = arith.constant 0 : index
    %c0_4 = arith.constant 0 : index
    %3 = vector.load %arg4[%c0_3, %c0_4] : memref<1x96xf32, #tpu.memory_space<vmem>>, vector<1x96xf32>
    %4 = vector.broadcast %3 : vector<1x96xf32> to vector<64x96xf32>
    %5 = arith.addf %2, %4 : vector<64x96xf32>
    %c0_5 = arith.constant 0 : index
    %c0_6 = arith.constant 0 : index
    %6 = vector.load %arg3[%c0_5, %c0_6] : memref<32x96xf32, #tpu.memory_space<vmem>>, vector<32x96xf32>
    %c0_7 = arith.constant 0 : index
    %c0_8 = arith.constant 0 : index
    %7 = vector.load %arg5[%c0_7, %c0_8] : memref<1x32xf32, #tpu.memory_space<vmem>>, vector<1x32xf32>
    %8 = vector.shape_cast %7 : vector<1x32xf32> to vector<1x32xf32>
    %9 = vector.broadcast %8 : vector<1x32xf32> to vector<8x32xf32>
    %c0_9 = arith.constant 0 : index
    %c0_10 = arith.constant 0 : index
    %c0_11 = arith.constant 0 : index
    %10 = vector.load %arg1[%c0_9, %c0_10, %c0_11] : memref<2x8x32xf32, #tpu.memory_space<vmem>>, vector<1x8x32xf32>
    %11 = vector.shape_cast %10 : vector<1x8x32xf32> to vector<8x32xf32>
    %cst_12 = arith.constant dense<0.000000e+00> : vector<8x96xf32>
    %12 = tpu.matmul %11, %6, %cst_12 {dimension_numbers = #tpu.dot_dimension_numbers<[1], [0], [0], [1], [0, 0, 1, 1], [], []>} : vector<8x32xf32>, vector<32x96xf32>, vector<8x96xf32> -> vector<8x96xf32>
    %13 = vector.extract_strided_slice %5 {offsets = [0, 0], sizes = [8, 96], strides = [1, 1]} : vector<64x96xf32> to vector<8x96xf32>
    %14 = vector.extract_strided_slice %13 {offsets = [0, 0], sizes = [8, 32], strides = [1, 1]} : vector<8x96xf32> to vector<8x32xf32>
    %15 = vector.extract_strided_slice %12 {offsets = [0, 0], sizes = [8, 32], strides = [1, 1]} : vector<8x96xf32> to vector<8x32xf32>
    %16 = arith.addf %14, %15 : vector<8x32xf32>
    %17 = arith.negf %16 : vector<8x32xf32>
    %18 = math.exp %17 : vector<8x32xf32>
    %cst_13 = arith.constant 1.000000e+00 : f32
    %19 = vector.broadcast %cst_13 : f32 to vector<8x32xf32>
    %20 = arith.addf %19, %18 : vector<8x32xf32>
    %21 = arith.divf %19, %20 : vector<8x32xf32>
    %22 = vector.extract_strided_slice %13 {offsets = [0, 32], sizes = [8, 32], strides = [1, 1]} : vector<8x96xf32> to vector<8x32xf32>
    %23 = vector.extract_strided_slice %12 {offsets = [0, 32], sizes = [8, 32], strides = [1, 1]} : vector<8x96xf32> to vector<8x32xf32>
    %24 = arith.addf %22, %23 : vector<8x32xf32>
    %25 = arith.negf %24 : vector<8x32xf32>
    %26 = math.exp %25 : vector<8x32xf32>
    %cst_14 = arith.constant 1.000000e+00 : f32
    %27 = vector.broadcast %cst_14 : f32 to vector<8x32xf32>
    %28 = arith.addf %27, %26 : vector<8x32xf32>
    %29 = arith.divf %27, %28 : vector<8x32xf32>
    %30 = vector.extract_strided_slice %13 {offsets = [0, 64], sizes = [8, 32], strides = [1, 1]} : vector<8x96xf32> to vector<8x32xf32>
    %31 = vector.extract_strided_slice %12 {offsets = [0, 64], sizes = [8, 32], strides = [1, 1]} : vector<8x96xf32> to vector<8x32xf32>
    %32 = arith.addf %31, %9 : vector<8x32xf32>
    %33 = arith.mulf %21, %32 : vector<8x32xf32>
    %34 = arith.addf %30, %33 : vector<8x32xf32>
    %35 = math.tanh %34 : vector<8x32xf32>
    %cst_15 = arith.constant 1.000000e+00 : f32
    %36 = vector.broadcast %cst_15 : f32 to vector<8x32xf32>
    %37 = arith.subf %36, %29 : vector<8x32xf32>
    %38 = arith.mulf %37, %35 : vector<8x32xf32>
    %39 = arith.mulf %29, %11 : vector<8x32xf32>
    %40 = arith.addf %38, %39 : vector<8x32xf32>
    %c0_16 = arith.constant 0 : index
    %c0_17 = arith.constant 0 : index
    %41 = vector.load %arg14[%c0_16, %c0_17] : memref<64x32xf32, #tpu.memory_space<vmem>>, vector<8x32xf32>
    tpu.vector_store %arg14[%c0_16, %c0_17], %40 {strides = array<i32>} : memref<64x32xf32, #tpu.memory_space<vmem>>, vector<8x32xf32>,
    %cst_18 = arith.constant dense<0.000000e+00> : vector<8x96xf32>
    %42 = tpu.matmul %40, %6, %cst_18 {dimension_numbers = #tpu.dot_dimension_numbers<[1], [0], [0], [1], [0, 0, 1, 1], [], []>} : vector<8x32xf32>, vector<32x96xf32>, vector<8x96xf32> -> vector<8x96xf32>
    %43 = vector.extract_strided_slice %5 {offsets = [8, 0], sizes = [8, 96], strides = [1, 1]} : vector<64x96xf32> to vector<8x96xf32>
    %44 = vector.extract_strided_slice %43 {offsets = [0, 0], sizes = [8, 32], strides = [1, 1]} : vector<8x96xf32> to vector<8x32xf32>
    %45 = vector.extract_strided_slice %42 {offsets = [0, 0], sizes = [8, 32], strides = [1, 1]} : vector<8x96xf32> to vector<8x32xf32>
    %46 = arith.addf %44, %45 : vector<8x32xf32>
    %47 = arith.negf %46 : vector<8x32xf32>
    %48 = math.exp %47 : vector<8x32xf32>
    %cst_19 = arith.constant 1.000000e+00 : f32
    %49 = vector.broadcast %cst_19 : f32 to vector<8x32xf32>
    %50 = arith.addf %49, %48 : vector<8x32xf32>
    %51 = arith.divf %49, %50 : vector<8x32xf32>
    %52 = vector.extract_strided_slice %43 {offsets = [0, 32], sizes = [8, 32], strides = [1, 1]} : vector<8x96xf32> to vector<8x32xf32>
    %53 = vector.extract_strided_slice %42 {offsets = [0, 32], sizes = [8, 32], strides = [1, 1]} : vector<8x96xf32> to vector<8x32xf32>
    %54 = arith.addf %52, %53 : vector<8x32xf32>
    %55 = arith.negf %54 : vector<8x32xf32>
    %56 = math.exp %55 : vector<8x32xf32>
    %cst_20 = arith.constant 1.000000e+00 : f32
    %57 = vector.broadcast %cst_20 : f32 to vector<8x32xf32>
    %58 = arith.addf %57, %56 : vector<8x32xf32>
    %59 = arith.divf %57, %58 : vector<8x32xf32>
    %60 = vector.extract_strided_slice %43 {offsets = [0, 64], sizes = [8, 32], strides = [1, 1]} : vector<8x96xf32> to vector<8x32xf32>
    %61 = vector.extract_strided_slice %42 {offsets = [0, 64], sizes = [8, 32], strides = [1, 1]} : vector<8x96xf32> to vector<8x32xf32>
    %62 = arith.addf %61, %9 : vector<8x32xf32>
    %63 = arith.mulf %51, %62 : vector<8x32xf32>
    %64 = arith.addf %60, %63 : vector<8x32xf32>
    %65 = math.tanh %64 : vector<8x32xf32>
    %cst_21 = arith.constant 1.000000e+00 : f32
    %66 = vector.broadcast %cst_21 : f32 to vector<8x32xf32>
    %67 = arith.subf %66, %59 : vector<8x32xf32>
    %68 = arith.mulf %67, %65 : vector<8x32xf32>
    %69 = arith.mulf %59, %40 : vector<8x32xf32>
    %70 = arith.addf %68, %69 : vector<8x32xf32>
    %c8 = arith.constant 8 : index
    %c0_22 = arith.constant 0 : index
    %71 = vector.load %arg14[%c8, %c0_22] : memref<64x32xf32, #tpu.memory_space<vmem>>, vector<8x32xf32>
    tpu.vector_store %arg14[%c8, %c0_22], %70 {strides = array<i32>} : memref<64x32xf32, #tpu.memory_space<vmem>>, vector<8x32xf32>,
    %cst_23 = arith.constant dense<0.000000e+00> : vector<8x96xf32>
    %72 = tpu.matmul %70, %6, %cst_23 {dimension_numbers = #tpu.dot_dimension_numbers<[1], [0], [0], [1], [0, 0, 1, 1], [], []>} : vector<8x32xf32>, vector<32x96xf32>, vector<8x96xf32> -> vector<8x96xf32>
    %73 = vector.extract_strided_slice %5 {offsets = [16, 0], sizes = [8, 96], strides = [1, 1]} : vector<64x96xf32> to vector<8x96xf32>
    %74 = vector.extract_strided_slice %73 {offsets = [0, 0], sizes = [8, 32], strides = [1, 1]} : vector<8x96xf32> to vector<8x32xf32>
    %75 = vector.extract_strided_slice %72 {offsets = [0, 0], sizes = [8, 32], strides = [1, 1]} : vector<8x96xf32> to vector<8x32xf32>
    %76 = arith.addf %74, %75 : vector<8x32xf32>
    %77 = arith.negf %76 : vector<8x32xf32>
    %78 = math.exp %77 : vector<8x32xf32>
    %cst_24 = arith.constant 1.000000e+00 : f32
    %79 = vector.broadcast %cst_24 : f32 to vector<8x32xf32>
    %80 = arith.addf %79, %78 : vector<8x32xf32>
    %81 = arith.divf %79, %80 : vector<8x32xf32>
    %82 = vector.extract_strided_slice %73 {offsets = [0, 32], sizes = [8, 32], strides = [1, 1]} : vector<8x96xf32> to vector<8x32xf32>
    %83 = vector.extract_strided_slice %72 {offsets = [0, 32], sizes = [8, 32], strides = [1, 1]} : vector<8x96xf32> to vector<8x32xf32>
    %84 = arith.addf %82, %83 : vector<8x32xf32>
    %85 = arith.negf %84 : vector<8x32xf32>
    %86 = math.exp %85 : vector<8x32xf32>
    %cst_25 = arith.constant 1.000000e+00 : f32
    %87 = vector.broadcast %cst_25 : f32 to vector<8x32xf32>
    %88 = arith.addf %87, %86 : vector<8x32xf32>
    %89 = arith.divf %87, %88 : vector<8x32xf32>
    %90 = vector.extract_strided_slice %73 {offsets = [0, 64], sizes = [8, 32], strides = [1, 1]} : vector<8x96xf32> to vector<8x32xf32>
    %91 = vector.extract_strided_slice %72 {offsets = [0, 64], sizes = [8, 32], strides = [1, 1]} : vector<8x96xf32> to vector<8x32xf32>
    %92 = arith.addf %91, %9 : vector<8x32xf32>
    %93 = arith.mulf %81, %92 : vector<8x32xf32>
    %94 = arith.addf %90, %93 : vector<8x32xf32>
    %95 = math.tanh %94 : vector<8x32xf32>
    %cst_26 = arith.constant 1.000000e+00 : f32
    %96 = vector.broadcast %cst_26 : f32 to vector<8x32xf32>
    %97 = arith.subf %96, %89 : vector<8x32xf32>
    %98 = arith.mulf %97, %95 : vector<8x32xf32>
    %99 = arith.mulf %89, %70 : vector<8x32xf32>
    %100 = arith.addf %98, %99 : vector<8x32xf32>
    %c16 = arith.constant 16 : index
    %c0_27 = arith.constant 0 : index
    %101 = vector.load %arg14[%c16, %c0_27] : memref<64x32xf32, #tpu.memory_space<vmem>>, vector<8x32xf32>
    tpu.vector_store %arg14[%c16, %c0_27], %100 {strides = array<i32>} : memref<64x32xf32, #tpu.memory_space<vmem>>, vector<8x32xf32>,
    %cst_28 = arith.constant dense<0.000000e+00> : vector<8x96xf32>
    %102 = tpu.matmul %100, %6, %cst_28 {dimension_numbers = #tpu.dot_dimension_numbers<[1], [0], [0], [1], [0, 0, 1, 1], [], []>} : vector<8x32xf32>, vector<32x96xf32>, vector<8x96xf32> -> vector<8x96xf32>
    %103 = vector.extract_strided_slice %5 {offsets = [24, 0], sizes = [8, 96], strides = [1, 1]} : vector<64x96xf32> to vector<8x96xf32>
    %104 = vector.extract_strided_slice %103 {offsets = [0, 0], sizes = [8, 32], strides = [1, 1]} : vector<8x96xf32> to vector<8x32xf32>
    %105 = vector.extract_strided_slice %102 {offsets = [0, 0], sizes = [8, 32], strides = [1, 1]} : vector<8x96xf32> to vector<8x32xf32>
    %106 = arith.addf %104, %105 : vector<8x32xf32>
    %107 = arith.negf %106 : vector<8x32xf32>
    %108 = math.exp %107 : vector<8x32xf32>
    %cst_29 = arith.constant 1.000000e+00 : f32
    %109 = vector.broadcast %cst_29 : f32 to vector<8x32xf32>
    %110 = arith.addf %109, %108 : vector<8x32xf32>
    %111 = arith.divf %109, %110 : vector<8x32xf32>
    %112 = vector.extract_strided_slice %103 {offsets = [0, 32], sizes = [8, 32], strides = [1, 1]} : vector<8x96xf32> to vector<8x32xf32>
    %113 = vector.extract_strided_slice %102 {offsets = [0, 32], sizes = [8, 32], strides = [1, 1]} : vector<8x96xf32> to vector<8x32xf32>
    %114 = arith.addf %112, %113 : vector<8x32xf32>
    %115 = arith.negf %114 : vector<8x32xf32>
    %116 = math.exp %115 : vector<8x32xf32>
    %cst_30 = arith.constant 1.000000e+00 : f32
    %117 = vector.broadcast %cst_30 : f32 to vector<8x32xf32>
    %118 = arith.addf %117, %116 : vector<8x32xf32>
    %119 = arith.divf %117, %118 : vector<8x32xf32>
    %120 = vector.extract_strided_slice %103 {offsets = [0, 64], sizes = [8, 32], strides = [1, 1]} : vector<8x96xf32> to vector<8x32xf32>
    %121 = vector.extract_strided_slice %102 {offsets = [0, 64], sizes = [8, 32], strides = [1, 1]} : vector<8x96xf32> to vector<8x32xf32>
    %122 = arith.addf %121, %9 : vector<8x32xf32>
    %123 = arith.mulf %111, %122 : vector<8x32xf32>
    %124 = arith.addf %120, %123 : vector<8x32xf32>
    %125 = math.tanh %124 : vector<8x32xf32>
    %cst_31 = arith.constant 1.000000e+00 : f32
    %126 = vector.broadcast %cst_31 : f32 to vector<8x32xf32>
    %127 = arith.subf %126, %119 : vector<8x32xf32>
    %128 = arith.mulf %127, %125 : vector<8x32xf32>
    %129 = arith.mulf %119, %100 : vector<8x32xf32>
    %130 = arith.addf %128, %129 : vector<8x32xf32>
    %c24 = arith.constant 24 : index
    %c0_32 = arith.constant 0 : index
    %131 = vector.load %arg14[%c24, %c0_32] : memref<64x32xf32, #tpu.memory_space<vmem>>, vector<8x32xf32>
    tpu.vector_store %arg14[%c24, %c0_32], %130 {strides = array<i32>} : memref<64x32xf32, #tpu.memory_space<vmem>>, vector<8x32xf32>,
    %cst_33 = arith.constant dense<0.000000e+00> : vector<8x96xf32>
    %132 = tpu.matmul %130, %6, %cst_33 {dimension_numbers = #tpu.dot_dimension_numbers<[1], [0], [0], [1], [0, 0, 1, 1], [], []>} : vector<8x32xf32>, vector<32x96xf32>, vector<8x96xf32> -> vector<8x96xf32>
    %133 = vector.extract_strided_slice %5 {offsets = [32, 0], sizes = [8, 96], strides = [1, 1]} : vector<64x96xf32> to vector<8x96xf32>
    %134 = vector.extract_strided_slice %133 {offsets = [0, 0], sizes = [8, 32], strides = [1, 1]} : vector<8x96xf32> to vector<8x32xf32>
    %135 = vector.extract_strided_slice %132 {offsets = [0, 0], sizes = [8, 32], strides = [1, 1]} : vector<8x96xf32> to vector<8x32xf32>
    %136 = arith.addf %134, %135 : vector<8x32xf32>
    %137 = arith.negf %136 : vector<8x32xf32>
    %138 = math.exp %137 : vector<8x32xf32>
    %cst_34 = arith.constant 1.000000e+00 : f32
    %139 = vector.broadcast %cst_34 : f32 to vector<8x32xf32>
    %140 = arith.addf %139, %138 : vector<8x32xf32>
    %141 = arith.divf %139, %140 : vector<8x32xf32>
    %142 = vector.extract_strided_slice %133 {offsets = [0, 32], sizes = [8, 32], strides = [1, 1]} : vector<8x96xf32> to vector<8x32xf32>
    %143 = vector.extract_strided_slice %132 {offsets = [0, 32], sizes = [8, 32], strides = [1, 1]} : vector<8x96xf32> to vector<8x32xf32>
    %144 = arith.addf %142, %143 : vector<8x32xf32>
    %145 = arith.negf %144 : vector<8x32xf32>
    %146 = math.exp %145 : vector<8x32xf32>
    %cst_35 = arith.constant 1.000000e+00 : f32
    %147 = vector.broadcast %cst_35 : f32 to vector<8x32xf32>
    %148 = arith.addf %147, %146 : vector<8x32xf32>
    %149 = arith.divf %147, %148 : vector<8x32xf32>
    %150 = vector.extract_strided_slice %133 {offsets = [0, 64], sizes = [8, 32], strides = [1, 1]} : vector<8x96xf32> to vector<8x32xf32>
    %151 = vector.extract_strided_slice %132 {offsets = [0, 64], sizes = [8, 32], strides = [1, 1]} : vector<8x96xf32> to vector<8x32xf32>
    %152 = arith.addf %151, %9 : vector<8x32xf32>
    %153 = arith.mulf %141, %152 : vector<8x32xf32>
    %154 = arith.addf %150, %153 : vector<8x32xf32>
    %155 = math.tanh %154 : vector<8x32xf32>
    %cst_36 = arith.constant 1.000000e+00 : f32
    %156 = vector.broadcast %cst_36 : f32 to vector<8x32xf32>
    %157 = arith.subf %156, %149 : vector<8x32xf32>
    %158 = arith.mulf %157, %155 : vector<8x32xf32>
    %159 = arith.mulf %149, %130 : vector<8x32xf32>
    %160 = arith.addf %158, %159 : vector<8x32xf32>
    %c32 = arith.constant 32 : index
    %c0_37 = arith.constant 0 : index
    %161 = vector.load %arg14[%c32, %c0_37] : memref<64x32xf32, #tpu.memory_space<vmem>>, vector<8x32xf32>
    tpu.vector_store %arg14[%c32, %c0_37], %160 {strides = array<i32>} : memref<64x32xf32, #tpu.memory_space<vmem>>, vector<8x32xf32>,
    %cst_38 = arith.constant dense<0.000000e+00> : vector<8x96xf32>
    %162 = tpu.matmul %160, %6, %cst_38 {dimension_numbers = #tpu.dot_dimension_numbers<[1], [0], [0], [1], [0, 0, 1, 1], [], []>} : vector<8x32xf32>, vector<32x96xf32>, vector<8x96xf32> -> vector<8x96xf32>
    %163 = vector.extract_strided_slice %5 {offsets = [40, 0], sizes = [8, 96], strides = [1, 1]} : vector<64x96xf32> to vector<8x96xf32>
    %164 = vector.extract_strided_slice %163 {offsets = [0, 0], sizes = [8, 32], strides = [1, 1]} : vector<8x96xf32> to vector<8x32xf32>
    %165 = vector.extract_strided_slice %162 {offsets = [0, 0], sizes = [8, 32], strides = [1, 1]} : vector<8x96xf32> to vector<8x32xf32>
    %166 = arith.addf %164, %165 : vector<8x32xf32>
    %167 = arith.negf %166 : vector<8x32xf32>
    %168 = math.exp %167 : vector<8x32xf32>
    %cst_39 = arith.constant 1.000000e+00 : f32
    %169 = vector.broadcast %cst_39 : f32 to vector<8x32xf32>
    %170 = arith.addf %169, %168 : vector<8x32xf32>
    %171 = arith.divf %169, %170 : vector<8x32xf32>
    %172 = vector.extract_strided_slice %163 {offsets = [0, 32], sizes = [8, 32], strides = [1, 1]} : vector<8x96xf32> to vector<8x32xf32>
    %173 = vector.extract_strided_slice %162 {offsets = [0, 32], sizes = [8, 32], strides = [1, 1]} : vector<8x96xf32> to vector<8x32xf32>
    %174 = arith.addf %172, %173 : vector<8x32xf32>
    %175 = arith.negf %174 : vector<8x32xf32>
    %176 = math.exp %175 : vector<8x32xf32>
    %cst_40 = arith.constant 1.000000e+00 : f32
    %177 = vector.broadcast %cst_40 : f32 to vector<8x32xf32>
    %178 = arith.addf %177, %176 : vector<8x32xf32>
    %179 = arith.divf %177, %178 : vector<8x32xf32>
    %180 = vector.extract_strided_slice %163 {offsets = [0, 64], sizes = [8, 32], strides = [1, 1]} : vector<8x96xf32> to vector<8x32xf32>
    %181 = vector.extract_strided_slice %162 {offsets = [0, 64], sizes = [8, 32], strides = [1, 1]} : vector<8x96xf32> to vector<8x32xf32>
    %182 = arith.addf %181, %9 : vector<8x32xf32>
    %183 = arith.mulf %171, %182 : vector<8x32xf32>
    %184 = arith.addf %180, %183 : vector<8x32xf32>
    %185 = math.tanh %184 : vector<8x32xf32>
    %cst_41 = arith.constant 1.000000e+00 : f32
    %186 = vector.broadcast %cst_41 : f32 to vector<8x32xf32>
    %187 = arith.subf %186, %179 : vector<8x32xf32>
    %188 = arith.mulf %187, %185 : vector<8x32xf32>
    %189 = arith.mulf %179, %160 : vector<8x32xf32>
    %190 = arith.addf %188, %189 : vector<8x32xf32>
    %c40 = arith.constant 40 : index
    %c0_42 = arith.constant 0 : index
    %191 = vector.load %arg14[%c40, %c0_42] : memref<64x32xf32, #tpu.memory_space<vmem>>, vector<8x32xf32>
    tpu.vector_store %arg14[%c40, %c0_42], %190 {strides = array<i32>} : memref<64x32xf32, #tpu.memory_space<vmem>>, vector<8x32xf32>,
    %cst_43 = arith.constant dense<0.000000e+00> : vector<8x96xf32>
    %192 = tpu.matmul %190, %6, %cst_43 {dimension_numbers = #tpu.dot_dimension_numbers<[1], [0], [0], [1], [0, 0, 1, 1], [], []>} : vector<8x32xf32>, vector<32x96xf32>, vector<8x96xf32> -> vector<8x96xf32>
    %193 = vector.extract_strided_slice %5 {offsets = [48, 0], sizes = [8, 96], strides = [1, 1]} : vector<64x96xf32> to vector<8x96xf32>
    %194 = vector.extract_strided_slice %193 {offsets = [0, 0], sizes = [8, 32], strides = [1, 1]} : vector<8x96xf32> to vector<8x32xf32>
    %195 = vector.extract_strided_slice %192 {offsets = [0, 0], sizes = [8, 32], strides = [1, 1]} : vector<8x96xf32> to vector<8x32xf32>
    %196 = arith.addf %194, %195 : vector<8x32xf32>
    %197 = arith.negf %196 : vector<8x32xf32>
    %198 = math.exp %197 : vector<8x32xf32>
    %cst_44 = arith.constant 1.000000e+00 : f32
    %199 = vector.broadcast %cst_44 : f32 to vector<8x32xf32>
    %200 = arith.addf %199, %198 : vector<8x32xf32>
    %201 = arith.divf %199, %200 : vector<8x32xf32>
    %202 = vector.extract_strided_slice %193 {offsets = [0, 32], sizes = [8, 32], strides = [1, 1]} : vector<8x96xf32> to vector<8x32xf32>
    %203 = vector.extract_strided_slice %192 {offsets = [0, 32], sizes = [8, 32], strides = [1, 1]} : vector<8x96xf32> to vector<8x32xf32>
    %204 = arith.addf %202, %203 : vector<8x32xf32>
    %205 = arith.negf %204 : vector<8x32xf32>
    %206 = math.exp %205 : vector<8x32xf32>
    %cst_45 = arith.constant 1.000000e+00 : f32
    %207 = vector.broadcast %cst_45 : f32 to vector<8x32xf32>
    %208 = arith.addf %207, %206 : vector<8x32xf32>
    %209 = arith.divf %207, %208 : vector<8x32xf32>
    %210 = vector.extract_strided_slice %193 {offsets = [0, 64], sizes = [8, 32], strides = [1, 1]} : vector<8x96xf32> to vector<8x32xf32>
    %211 = vector.extract_strided_slice %192 {offsets = [0, 64], sizes = [8, 32], strides = [1, 1]} : vector<8x96xf32> to vector<8x32xf32>
    %212 = arith.addf %211, %9 : vector<8x32xf32>
    %213 = arith.mulf %201, %212 : vector<8x32xf32>
    %214 = arith.addf %210, %213 : vector<8x32xf32>
    %215 = math.tanh %214 : vector<8x32xf32>
    %cst_46 = arith.constant 1.000000e+00 : f32
    %216 = vector.broadcast %cst_46 : f32 to vector<8x32xf32>
    %217 = arith.subf %216, %209 : vector<8x32xf32>
    %218 = arith.mulf %217, %215 : vector<8x32xf32>
    %219 = arith.mulf %209, %190 : vector<8x32xf32>
    %220 = arith.addf %218, %219 : vector<8x32xf32>
    %c48 = arith.constant 48 : index
    %c0_47 = arith.constant 0 : index
    %221 = vector.load %arg14[%c48, %c0_47] : memref<64x32xf32, #tpu.memory_space<vmem>>, vector<8x32xf32>
    tpu.vector_store %arg14[%c48, %c0_47], %220 {strides = array<i32>} : memref<64x32xf32, #tpu.memory_space<vmem>>, vector<8x32xf32>,
    %cst_48 = arith.constant dense<0.000000e+00> : vector<8x96xf32>
    %222 = tpu.matmul %220, %6, %cst_48 {dimension_numbers = #tpu.dot_dimension_numbers<[1], [0], [0], [1], [0, 0, 1, 1], [], []>} : vector<8x32xf32>, vector<32x96xf32>, vector<8x96xf32> -> vector<8x96xf32>
    %223 = vector.extract_strided_slice %5 {offsets = [56, 0], sizes = [8, 96], strides = [1, 1]} : vector<64x96xf32> to vector<8x96xf32>
    %224 = vector.extract_strided_slice %223 {offsets = [0, 0], sizes = [8, 32], strides = [1, 1]} : vector<8x96xf32> to vector<8x32xf32>
    %225 = vector.extract_strided_slice %222 {offsets = [0, 0], sizes = [8, 32], strides = [1, 1]} : vector<8x96xf32> to vector<8x32xf32>
    %226 = arith.addf %224, %225 : vector<8x32xf32>
    %227 = arith.negf %226 : vector<8x32xf32>
    %228 = math.exp %227 : vector<8x32xf32>
    %cst_49 = arith.constant 1.000000e+00 : f32
    %229 = vector.broadcast %cst_49 : f32 to vector<8x32xf32>
    %230 = arith.addf %229, %228 : vector<8x32xf32>
    %231 = arith.divf %229, %230 : vector<8x32xf32>
    %232 = vector.extract_strided_slice %223 {offsets = [0, 32], sizes = [8, 32], strides = [1, 1]} : vector<8x96xf32> to vector<8x32xf32>
    %233 = vector.extract_strided_slice %222 {offsets = [0, 32], sizes = [8, 32], strides = [1, 1]} : vector<8x96xf32> to vector<8x32xf32>
    %234 = arith.addf %232, %233 : vector<8x32xf32>
    %235 = arith.negf %234 : vector<8x32xf32>
    %236 = math.exp %235 : vector<8x32xf32>
    %cst_50 = arith.constant 1.000000e+00 : f32
    %237 = vector.broadcast %cst_50 : f32 to vector<8x32xf32>
    %238 = arith.addf %237, %236 : vector<8x32xf32>
    %239 = arith.divf %237, %238 : vector<8x32xf32>
    %240 = vector.extract_strided_slice %223 {offsets = [0, 64], sizes = [8, 32], strides = [1, 1]} : vector<8x96xf32> to vector<8x32xf32>
    %241 = vector.extract_strided_slice %222 {offsets = [0, 64], sizes = [8, 32], strides = [1, 1]} : vector<8x96xf32> to vector<8x32xf32>
    %242 = arith.addf %241, %9 : vector<8x32xf32>
    %243 = arith.mulf %231, %242 : vector<8x32xf32>
    %244 = arith.addf %240, %243 : vector<8x32xf32>
    %245 = math.tanh %244 : vector<8x32xf32>
    %cst_51 = arith.constant 1.000000e+00 : f32
    %246 = vector.broadcast %cst_51 : f32 to vector<8x32xf32>
    %247 = arith.subf %246, %239 : vector<8x32xf32>
    %248 = arith.mulf %247, %245 : vector<8x32xf32>
    %249 = arith.mulf %239, %220 : vector<8x32xf32>
    %250 = arith.addf %248, %249 : vector<8x32xf32>
    %c56 = arith.constant 56 : index
    %c0_52 = arith.constant 0 : index
    %251 = vector.load %arg14[%c56, %c0_52] : memref<64x32xf32, #tpu.memory_space<vmem>>, vector<8x32xf32>
    tpu.vector_store %arg14[%c56, %c0_52], %250 {strides = array<i32>} : memref<64x32xf32, #tpu.memory_space<vmem>>, vector<8x32xf32>,
    %c0_53 = arith.constant 0 : index
    %c0_54 = arith.constant 0 : index
    %c0_55 = arith.constant 0 : index
    %252 = vector.load %arg13[%c0_53, %c0_54, %c0_55] : memref<2x8x32xf32, #tpu.memory_space<vmem>>, vector<1x8x32xf32>
    %253 = vector.shape_cast %252 : vector<1x8x32xf32> to vector<8x32xf32>
    %254 = vector.shape_cast %250 : vector<8x32xf32> to vector<1x8x32xf32>
    tpu.vector_store %arg13[%c0_53, %c0_54, %c0_55], %254 {strides = array<i32>} : memref<2x8x32xf32, #tpu.memory_space<vmem>>, vector<1x8x32xf32>,
    %c0_56 = arith.constant 0 : index
    %c0_57 = arith.constant 0 : index
    %255 = vector.load %arg14[%c0_56, %c0_57] : memref<64x32xf32, #tpu.memory_space<vmem>>, vector<64x32xf32>
    %c0_58 = arith.constant 0 : index
    %c0_59 = arith.constant 0 : index
    %256 = vector.load %arg6[%c0_58, %c0_59] : memref<32x96xf32, #tpu.memory_space<vmem>>, vector<32x96xf32>
    %cst_60 = arith.constant dense<0.000000e+00> : vector<64x96xf32>
    %257 = tpu.matmul %255, %256, %cst_60 {dimension_numbers = #tpu.dot_dimension_numbers<[1], [0], [0], [1], [0, 0, 1, 1], [], []>} : vector<64x32xf32>, vector<32x96xf32>, vector<64x96xf32> -> vector<64x96xf32>
    %c0_61 = arith.constant 0 : index
    %c0_62 = arith.constant 0 : index
    %258 = vector.load %arg8[%c0_61, %c0_62] : memref<1x96xf32, #tpu.memory_space<vmem>>, vector<1x96xf32>
    %259 = vector.broadcast %258 : vector<1x96xf32> to vector<64x96xf32>
    %260 = arith.addf %257, %259 : vector<64x96xf32>
    %c0_63 = arith.constant 0 : index
    %c0_64 = arith.constant 0 : index
    %261 = vector.load %arg7[%c0_63, %c0_64] : memref<32x96xf32, #tpu.memory_space<vmem>>, vector<32x96xf32>
    %c0_65 = arith.constant 0 : index
    %c0_66 = arith.constant 0 : index
    %262 = vector.load %arg9[%c0_65, %c0_66] : memref<1x32xf32, #tpu.memory_space<vmem>>, vector<1x32xf32>
    %263 = vector.shape_cast %262 : vector<1x32xf32> to vector<1x32xf32>
    %264 = vector.broadcast %263 : vector<1x32xf32> to vector<8x32xf32>
    %c1 = arith.constant 1 : index
    %c0_67 = arith.constant 0 : index
    %c0_68 = arith.constant 0 : index
    %265 = vector.load %arg1[%c1, %c0_67, %c0_68] : memref<2x8x32xf32, #tpu.memory_space<vmem>>, vector<1x8x32xf32>
    %266 = vector.shape_cast %265 : vector<1x8x32xf32> to vector<8x32xf32>
    %cst_69 = arith.constant dense<0.000000e+00> : vector<8x96xf32>
    %267 = tpu.matmul %266, %261, %cst_69 {dimension_numbers = #tpu.dot_dimension_numbers<[1], [0], [0], [1], [0, 0, 1, 1], [], []>} : vector<8x32xf32>, vector<32x96xf32>, vector<8x96xf32> -> vector<8x96xf32>
    %268 = vector.extract_strided_slice %260 {offsets = [0, 0], sizes = [8, 96], strides = [1, 1]} : vector<64x96xf32> to vector<8x96xf32>
    %269 = vector.extract_strided_slice %268 {offsets = [0, 0], sizes = [8, 32], strides = [1, 1]} : vector<8x96xf32> to vector<8x32xf32>
    %270 = vector.extract_strided_slice %267 {offsets = [0, 0], sizes = [8, 32], strides = [1, 1]} : vector<8x96xf32> to vector<8x32xf32>
    %271 = arith.addf %269, %270 : vector<8x32xf32>
    %272 = arith.negf %271 : vector<8x32xf32>
    %273 = math.exp %272 : vector<8x32xf32>
    %cst_70 = arith.constant 1.000000e+00 : f32
    %274 = vector.broadcast %cst_70 : f32 to vector<8x32xf32>
    %275 = arith.addf %274, %273 : vector<8x32xf32>
    %276 = arith.divf %274, %275 : vector<8x32xf32>
    %277 = vector.extract_strided_slice %268 {offsets = [0, 32], sizes = [8, 32], strides = [1, 1]} : vector<8x96xf32> to vector<8x32xf32>
    %278 = vector.extract_strided_slice %267 {offsets = [0, 32], sizes = [8, 32], strides = [1, 1]} : vector<8x96xf32> to vector<8x32xf32>
    %279 = arith.addf %277, %278 : vector<8x32xf32>
    %280 = arith.negf %279 : vector<8x32xf32>
    %281 = math.exp %280 : vector<8x32xf32>
    %cst_71 = arith.constant 1.000000e+00 : f32
    %282 = vector.broadcast %cst_71 : f32 to vector<8x32xf32>
    %283 = arith.addf %282, %281 : vector<8x32xf32>
    %284 = arith.divf %282, %283 : vector<8x32xf32>
    %285 = vector.extract_strided_slice %268 {offsets = [0, 64], sizes = [8, 32], strides = [1, 1]} : vector<8x96xf32> to vector<8x32xf32>
    %286 = vector.extract_strided_slice %267 {offsets = [0, 64], sizes = [8, 32], strides = [1, 1]} : vector<8x96xf32> to vector<8x32xf32>
    %287 = arith.addf %286, %264 : vector<8x32xf32>
    %288 = arith.mulf %276, %287 : vector<8x32xf32>
    %289 = arith.addf %285, %288 : vector<8x32xf32>
    %290 = math.tanh %289 : vector<8x32xf32>
    %cst_72 = arith.constant 1.000000e+00 : f32
    %291 = vector.broadcast %cst_72 : f32 to vector<8x32xf32>
    %292 = arith.subf %291, %284 : vector<8x32xf32>
    %293 = arith.mulf %292, %290 : vector<8x32xf32>
    %294 = arith.mulf %284, %266 : vector<8x32xf32>
    %295 = arith.addf %293, %294 : vector<8x32xf32>
    %cst_73 = arith.constant dense<0.000000e+00> : vector<8x96xf32>
    %296 = tpu.matmul %295, %261, %cst_73 {dimension_numbers = #tpu.dot_dimension_numbers<[1], [0], [0], [1], [0, 0, 1, 1], [], []>} : vector<8x32xf32>, vector<32x96xf32>, vector<8x96xf32> -> vector<8x96xf32>
    %297 = vector.extract_strided_slice %260 {offsets = [8, 0], sizes = [8, 96], strides = [1, 1]} : vector<64x96xf32> to vector<8x96xf32>
    %298 = vector.extract_strided_slice %297 {offsets = [0, 0], sizes = [8, 32], strides = [1, 1]} : vector<8x96xf32> to vector<8x32xf32>
    %299 = vector.extract_strided_slice %296 {offsets = [0, 0], sizes = [8, 32], strides = [1, 1]} : vector<8x96xf32> to vector<8x32xf32>
    %300 = arith.addf %298, %299 : vector<8x32xf32>
    %301 = arith.negf %300 : vector<8x32xf32>
    %302 = math.exp %301 : vector<8x32xf32>
    %cst_74 = arith.constant 1.000000e+00 : f32
    %303 = vector.broadcast %cst_74 : f32 to vector<8x32xf32>
    %304 = arith.addf %303, %302 : vector<8x32xf32>
    %305 = arith.divf %303, %304 : vector<8x32xf32>
    %306 = vector.extract_strided_slice %297 {offsets = [0, 32], sizes = [8, 32], strides = [1, 1]} : vector<8x96xf32> to vector<8x32xf32>
    %307 = vector.extract_strided_slice %296 {offsets = [0, 32], sizes = [8, 32], strides = [1, 1]} : vector<8x96xf32> to vector<8x32xf32>
    %308 = arith.addf %306, %307 : vector<8x32xf32>
    %309 = arith.negf %308 : vector<8x32xf32>
    %310 = math.exp %309 : vector<8x32xf32>
    %cst_75 = arith.constant 1.000000e+00 : f32
    %311 = vector.broadcast %cst_75 : f32 to vector<8x32xf32>
    %312 = arith.addf %311, %310 : vector<8x32xf32>
    %313 = arith.divf %311, %312 : vector<8x32xf32>
    %314 = vector.extract_strided_slice %297 {offsets = [0, 64], sizes = [8, 32], strides = [1, 1]} : vector<8x96xf32> to vector<8x32xf32>
    %315 = vector.extract_strided_slice %296 {offsets = [0, 64], sizes = [8, 32], strides = [1, 1]} : vector<8x96xf32> to vector<8x32xf32>
    %316 = arith.addf %315, %264 : vector<8x32xf32>
    %317 = arith.mulf %305, %316 : vector<8x32xf32>
    %318 = arith.addf %314, %317 : vector<8x32xf32>
    %319 = math.tanh %318 : vector<8x32xf32>
    %cst_76 = arith.constant 1.000000e+00 : f32
    %320 = vector.broadcast %cst_76 : f32 to vector<8x32xf32>
    %321 = arith.subf %320, %313 : vector<8x32xf32>
    %322 = arith.mulf %321, %319 : vector<8x32xf32>
    %323 = arith.mulf %313, %295 : vector<8x32xf32>
    %324 = arith.addf %322, %323 : vector<8x32xf32>
    %cst_77 = arith.constant dense<0.000000e+00> : vector<8x96xf32>
    %325 = tpu.matmul %324, %261, %cst_77 {dimension_numbers = #tpu.dot_dimension_numbers<[1], [0], [0], [1], [0, 0, 1, 1], [], []>} : vector<8x32xf32>, vector<32x96xf32>, vector<8x96xf32> -> vector<8x96xf32>
    %326 = vector.extract_strided_slice %260 {offsets = [16, 0], sizes = [8, 96], strides = [1, 1]} : vector<64x96xf32> to vector<8x96xf32>
    %327 = vector.extract_strided_slice %326 {offsets = [0, 0], sizes = [8, 32], strides = [1, 1]} : vector<8x96xf32> to vector<8x32xf32>
    %328 = vector.extract_strided_slice %325 {offsets = [0, 0], sizes = [8, 32], strides = [1, 1]} : vector<8x96xf32> to vector<8x32xf32>
    %329 = arith.addf %327, %328 : vector<8x32xf32>
    %330 = arith.negf %329 : vector<8x32xf32>
    %331 = math.exp %330 : vector<8x32xf32>
    %cst_78 = arith.constant 1.000000e+00 : f32
    %332 = vector.broadcast %cst_78 : f32 to vector<8x32xf32>
    %333 = arith.addf %332, %331 : vector<8x32xf32>
    %334 = arith.divf %332, %333 : vector<8x32xf32>
    %335 = vector.extract_strided_slice %326 {offsets = [0, 32], sizes = [8, 32], strides = [1, 1]} : vector<8x96xf32> to vector<8x32xf32>
    %336 = vector.extract_strided_slice %325 {offsets = [0, 32], sizes = [8, 32], strides = [1, 1]} : vector<8x96xf32> to vector<8x32xf32>
    %337 = arith.addf %335, %336 : vector<8x32xf32>
    %338 = arith.negf %337 : vector<8x32xf32>
    %339 = math.exp %338 : vector<8x32xf32>
    %cst_79 = arith.constant 1.000000e+00 : f32
    %340 = vector.broadcast %cst_79 : f32 to vector<8x32xf32>
    %341 = arith.addf %340, %339 : vector<8x32xf32>
    %342 = arith.divf %340, %341 : vector<8x32xf32>
    %343 = vector.extract_strided_slice %326 {offsets = [0, 64], sizes = [8, 32], strides = [1, 1]} : vector<8x96xf32> to vector<8x32xf32>
    %344 = vector.extract_strided_slice %325 {offsets = [0, 64], sizes = [8, 32], strides = [1, 1]} : vector<8x96xf32> to vector<8x32xf32>
    %345 = arith.addf %344, %264 : vector<8x32xf32>
    %346 = arith.mulf %334, %345 : vector<8x32xf32>
    %347 = arith.addf %343, %346 : vector<8x32xf32>
    %348 = math.tanh %347 : vector<8x32xf32>
    %cst_80 = arith.constant 1.000000e+00 : f32
    %349 = vector.broadcast %cst_80 : f32 to vector<8x32xf32>
    %350 = arith.subf %349, %342 : vector<8x32xf32>
    %351 = arith.mulf %350, %348 : vector<8x32xf32>
    %352 = arith.mulf %342, %324 : vector<8x32xf32>
    %353 = arith.addf %351, %352 : vector<8x32xf32>
    %cst_81 = arith.constant dense<0.000000e+00> : vector<8x96xf32>
    %354 = tpu.matmul %353, %261, %cst_81 {dimension_numbers = #tpu.dot_dimension_numbers<[1], [0], [0], [1], [0, 0, 1, 1], [], []>} : vector<8x32xf32>, vector<32x96xf32>, vector<8x96xf32> -> vector<8x96xf32>
    %355 = vector.extract_strided_slice %260 {offsets = [24, 0], sizes = [8, 96], strides = [1, 1]} : vector<64x96xf32> to vector<8x96xf32>
    %356 = vector.extract_strided_slice %355 {offsets = [0, 0], sizes = [8, 32], strides = [1, 1]} : vector<8x96xf32> to vector<8x32xf32>
    %357 = vector.extract_strided_slice %354 {offsets = [0, 0], sizes = [8, 32], strides = [1, 1]} : vector<8x96xf32> to vector<8x32xf32>
    %358 = arith.addf %356, %357 : vector<8x32xf32>
    %359 = arith.negf %358 : vector<8x32xf32>
    %360 = math.exp %359 : vector<8x32xf32>
    %cst_82 = arith.constant 1.000000e+00 : f32
    %361 = vector.broadcast %cst_82 : f32 to vector<8x32xf32>
    %362 = arith.addf %361, %360 : vector<8x32xf32>
    %363 = arith.divf %361, %362 : vector<8x32xf32>
    %364 = vector.extract_strided_slice %355 {offsets = [0, 32], sizes = [8, 32], strides = [1, 1]} : vector<8x96xf32> to vector<8x32xf32>
    %365 = vector.extract_strided_slice %354 {offsets = [0, 32], sizes = [8, 32], strides = [1, 1]} : vector<8x96xf32> to vector<8x32xf32>
    %366 = arith.addf %364, %365 : vector<8x32xf32>
    %367 = arith.negf %366 : vector<8x32xf32>
    %368 = math.exp %367 : vector<8x32xf32>
    %cst_83 = arith.constant 1.000000e+00 : f32
    %369 = vector.broadcast %cst_83 : f32 to vector<8x32xf32>
    %370 = arith.addf %369, %368 : vector<8x32xf32>
    %371 = arith.divf %369, %370 : vector<8x32xf32>
    %372 = vector.extract_strided_slice %355 {offsets = [0, 64], sizes = [8, 32], strides = [1, 1]} : vector<8x96xf32> to vector<8x32xf32>
    %373 = vector.extract_strided_slice %354 {offsets = [0, 64], sizes = [8, 32], strides = [1, 1]} : vector<8x96xf32> to vector<8x32xf32>
    %374 = arith.addf %373, %264 : vector<8x32xf32>
    %375 = arith.mulf %363, %374 : vector<8x32xf32>
    %376 = arith.addf %372, %375 : vector<8x32xf32>
    %377 = math.tanh %376 : vector<8x32xf32>
    %cst_84 = arith.constant 1.000000e+00 : f32
    %378 = vector.broadcast %cst_84 : f32 to vector<8x32xf32>
    %379 = arith.subf %378, %371 : vector<8x32xf32>
    %380 = arith.mulf %379, %377 : vector<8x32xf32>
    %381 = arith.mulf %371, %353 : vector<8x32xf32>
    %382 = arith.addf %380, %381 : vector<8x32xf32>
    %cst_85 = arith.constant dense<0.000000e+00> : vector<8x96xf32>
    %383 = tpu.matmul %382, %261, %cst_85 {dimension_numbers = #tpu.dot_dimension_numbers<[1], [0], [0], [1], [0, 0, 1, 1], [], []>} : vector<8x32xf32>, vector<32x96xf32>, vector<8x96xf32> -> vector<8x96xf32>
    %384 = vector.extract_strided_slice %260 {offsets = [32, 0], sizes = [8, 96], strides = [1, 1]} : vector<64x96xf32> to vector<8x96xf32>
    %385 = vector.extract_strided_slice %384 {offsets = [0, 0], sizes = [8, 32], strides = [1, 1]} : vector<8x96xf32> to vector<8x32xf32>
    %386 = vector.extract_strided_slice %383 {offsets = [0, 0], sizes = [8, 32], strides = [1, 1]} : vector<8x96xf32> to vector<8x32xf32>
    %387 = arith.addf %385, %386 : vector<8x32xf32>
    %388 = arith.negf %387 : vector<8x32xf32>
    %389 = math.exp %388 : vector<8x32xf32>
    %cst_86 = arith.constant 1.000000e+00 : f32
    %390 = vector.broadcast %cst_86 : f32 to vector<8x32xf32>
    %391 = arith.addf %390, %389 : vector<8x32xf32>
    %392 = arith.divf %390, %391 : vector<8x32xf32>
    %393 = vector.extract_strided_slice %384 {offsets = [0, 32], sizes = [8, 32], strides = [1, 1]} : vector<8x96xf32> to vector<8x32xf32>
    %394 = vector.extract_strided_slice %383 {offsets = [0, 32], sizes = [8, 32], strides = [1, 1]} : vector<8x96xf32> to vector<8x32xf32>
    %395 = arith.addf %393, %394 : vector<8x32xf32>
    %396 = arith.negf %395 : vector<8x32xf32>
    %397 = math.exp %396 : vector<8x32xf32>
    %cst_87 = arith.constant 1.000000e+00 : f32
    %398 = vector.broadcast %cst_87 : f32 to vector<8x32xf32>
    %399 = arith.addf %398, %397 : vector<8x32xf32>
    %400 = arith.divf %398, %399 : vector<8x32xf32>
    %401 = vector.extract_strided_slice %384 {offsets = [0, 64], sizes = [8, 32], strides = [1, 1]} : vector<8x96xf32> to vector<8x32xf32>
    %402 = vector.extract_strided_slice %383 {offsets = [0, 64], sizes = [8, 32], strides = [1, 1]} : vector<8x96xf32> to vector<8x32xf32>
    %403 = arith.addf %402, %264 : vector<8x32xf32>
    %404 = arith.mulf %392, %403 : vector<8x32xf32>
    %405 = arith.addf %401, %404 : vector<8x32xf32>
    %406 = math.tanh %405 : vector<8x32xf32>
    %cst_88 = arith.constant 1.000000e+00 : f32
    %407 = vector.broadcast %cst_88 : f32 to vector<8x32xf32>
    %408 = arith.subf %407, %400 : vector<8x32xf32>
    %409 = arith.mulf %408, %406 : vector<8x32xf32>
    %410 = arith.mulf %400, %382 : vector<8x32xf32>
    %411 = arith.addf %409, %410 : vector<8x32xf32>
    %cst_89 = arith.constant dense<0.000000e+00> : vector<8x96xf32>
    %412 = tpu.matmul %411, %261, %cst_89 {dimension_numbers = #tpu.dot_dimension_numbers<[1], [0], [0], [1], [0, 0, 1, 1], [], []>} : vector<8x32xf32>, vector<32x96xf32>, vector<8x96xf32> -> vector<8x96xf32>
    %413 = vector.extract_strided_slice %260 {offsets = [40, 0], sizes = [8, 96], strides = [1, 1]} : vector<64x96xf32> to vector<8x96xf32>
    %414 = vector.extract_strided_slice %413 {offsets = [0, 0], sizes = [8, 32], strides = [1, 1]} : vector<8x96xf32> to vector<8x32xf32>
    %415 = vector.extract_strided_slice %412 {offsets = [0, 0], sizes = [8, 32], strides = [1, 1]} : vector<8x96xf32> to vector<8x32xf32>
    %416 = arith.addf %414, %415 : vector<8x32xf32>
    %417 = arith.negf %416 : vector<8x32xf32>
    %418 = math.exp %417 : vector<8x32xf32>
    %cst_90 = arith.constant 1.000000e+00 : f32
    %419 = vector.broadcast %cst_90 : f32 to vector<8x32xf32>
    %420 = arith.addf %419, %418 : vector<8x32xf32>
    %421 = arith.divf %419, %420 : vector<8x32xf32>
    %422 = vector.extract_strided_slice %413 {offsets = [0, 32], sizes = [8, 32], strides = [1, 1]} : vector<8x96xf32> to vector<8x32xf32>
    %423 = vector.extract_strided_slice %412 {offsets = [0, 32], sizes = [8, 32], strides = [1, 1]} : vector<8x96xf32> to vector<8x32xf32>
    %424 = arith.addf %422, %423 : vector<8x32xf32>
    %425 = arith.negf %424 : vector<8x32xf32>
    %426 = math.exp %425 : vector<8x32xf32>
    %cst_91 = arith.constant 1.000000e+00 : f32
    %427 = vector.broadcast %cst_91 : f32 to vector<8x32xf32>
    %428 = arith.addf %427, %426 : vector<8x32xf32>
    %429 = arith.divf %427, %428 : vector<8x32xf32>
    %430 = vector.extract_strided_slice %413 {offsets = [0, 64], sizes = [8, 32], strides = [1, 1]} : vector<8x96xf32> to vector<8x32xf32>
    %431 = vector.extract_strided_slice %412 {offsets = [0, 64], sizes = [8, 32], strides = [1, 1]} : vector<8x96xf32> to vector<8x32xf32>
    %432 = arith.addf %431, %264 : vector<8x32xf32>
    %433 = arith.mulf %421, %432 : vector<8x32xf32>
    %434 = arith.addf %430, %433 : vector<8x32xf32>
    %435 = math.tanh %434 : vector<8x32xf32>
    %cst_92 = arith.constant 1.000000e+00 : f32
    %436 = vector.broadcast %cst_92 : f32 to vector<8x32xf32>
    %437 = arith.subf %436, %429 : vector<8x32xf32>
    %438 = arith.mulf %437, %435 : vector<8x32xf32>
    %439 = arith.mulf %429, %411 : vector<8x32xf32>
    %440 = arith.addf %438, %439 : vector<8x32xf32>
    %cst_93 = arith.constant dense<0.000000e+00> : vector<8x96xf32>
    %441 = tpu.matmul %440, %261, %cst_93 {dimension_numbers = #tpu.dot_dimension_numbers<[1], [0], [0], [1], [0, 0, 1, 1], [], []>} : vector<8x32xf32>, vector<32x96xf32>, vector<8x96xf32> -> vector<8x96xf32>
    %442 = vector.extract_strided_slice %260 {offsets = [48, 0], sizes = [8, 96], strides = [1, 1]} : vector<64x96xf32> to vector<8x96xf32>
    %443 = vector.extract_strided_slice %442 {offsets = [0, 0], sizes = [8, 32], strides = [1, 1]} : vector<8x96xf32> to vector<8x32xf32>
    %444 = vector.extract_strided_slice %441 {offsets = [0, 0], sizes = [8, 32], strides = [1, 1]} : vector<8x96xf32> to vector<8x32xf32>
    %445 = arith.addf %443, %444 : vector<8x32xf32>
    %446 = arith.negf %445 : vector<8x32xf32>
    %447 = math.exp %446 : vector<8x32xf32>
    %cst_94 = arith.constant 1.000000e+00 : f32
    %448 = vector.broadcast %cst_94 : f32 to vector<8x32xf32>
    %449 = arith.addf %448, %447 : vector<8x32xf32>
    %450 = arith.divf %448, %449 : vector<8x32xf32>
    %451 = vector.extract_strided_slice %442 {offsets = [0, 32], sizes = [8, 32], strides = [1, 1]} : vector<8x96xf32> to vector<8x32xf32>
    %452 = vector.extract_strided_slice %441 {offsets = [0, 32], sizes = [8, 32], strides = [1, 1]} : vector<8x96xf32> to vector<8x32xf32>
    %453 = arith.addf %451, %452 : vector<8x32xf32>
    %454 = arith.negf %453 : vector<8x32xf32>
    %455 = math.exp %454 : vector<8x32xf32>
    %cst_95 = arith.constant 1.000000e+00 : f32
    %456 = vector.broadcast %cst_95 : f32 to vector<8x32xf32>
    %457 = arith.addf %456, %455 : vector<8x32xf32>
    %458 = arith.divf %456, %457 : vector<8x32xf32>
    %459 = vector.extract_strided_slice %442 {offsets = [0, 64], sizes = [8, 32], strides = [1, 1]} : vector<8x96xf32> to vector<8x32xf32>
    %460 = vector.extract_strided_slice %441 {offsets = [0, 64], sizes = [8, 32], strides = [1, 1]} : vector<8x96xf32> to vector<8x32xf32>
    %461 = arith.addf %460, %264 : vector<8x32xf32>
    %462 = arith.mulf %450, %461 : vector<8x32xf32>
    %463 = arith.addf %459, %462 : vector<8x32xf32>
    %464 = math.tanh %463 : vector<8x32xf32>
    %cst_96 = arith.constant 1.000000e+00 : f32
    %465 = vector.broadcast %cst_96 : f32 to vector<8x32xf32>
    %466 = arith.subf %465, %458 : vector<8x32xf32>
    %467 = arith.mulf %466, %464 : vector<8x32xf32>
    %468 = arith.mulf %458, %440 : vector<8x32xf32>
    %469 = arith.addf %467, %468 : vector<8x32xf32>
    %cst_97 = arith.constant dense<0.000000e+00> : vector<8x96xf32>
    %470 = tpu.matmul %469, %261, %cst_97 {dimension_numbers = #tpu.dot_dimension_numbers<[1], [0], [0], [1], [0, 0, 1, 1], [], []>} : vector<8x32xf32>, vector<32x96xf32>, vector<8x96xf32> -> vector<8x96xf32>
    %471 = vector.extract_strided_slice %260 {offsets = [56, 0], sizes = [8, 96], strides = [1, 1]} : vector<64x96xf32> to vector<8x96xf32>
    %472 = vector.extract_strided_slice %471 {offsets = [0, 0], sizes = [8, 32], strides = [1, 1]} : vector<8x96xf32> to vector<8x32xf32>
    %473 = vector.extract_strided_slice %470 {offsets = [0, 0], sizes = [8, 32], strides = [1, 1]} : vector<8x96xf32> to vector<8x32xf32>
    %474 = arith.addf %472, %473 : vector<8x32xf32>
    %475 = arith.negf %474 : vector<8x32xf32>
    %476 = math.exp %475 : vector<8x32xf32>
    %cst_98 = arith.constant 1.000000e+00 : f32
    %477 = vector.broadcast %cst_98 : f32 to vector<8x32xf32>
    %478 = arith.addf %477, %476 : vector<8x32xf32>
    %479 = arith.divf %477, %478 : vector<8x32xf32>
    %480 = vector.extract_strided_slice %471 {offsets = [0, 32], sizes = [8, 32], strides = [1, 1]} : vector<8x96xf32> to vector<8x32xf32>
    %481 = vector.extract_strided_slice %470 {offsets = [0, 32], sizes = [8, 32], strides = [1, 1]} : vector<8x96xf32> to vector<8x32xf32>
    %482 = arith.addf %480, %481 : vector<8x32xf32>
    %483 = arith.negf %482 : vector<8x32xf32>
    %484 = math.exp %483 : vector<8x32xf32>
    %cst_99 = arith.constant 1.000000e+00 : f32
    %485 = vector.broadcast %cst_99 : f32 to vector<8x32xf32>
    %486 = arith.addf %485, %484 : vector<8x32xf32>
    %487 = arith.divf %485, %486 : vector<8x32xf32>
    %488 = vector.extract_strided_slice %471 {offsets = [0, 64], sizes = [8, 32], strides = [1, 1]} : vector<8x96xf32> to vector<8x32xf32>
    %489 = vector.extract_strided_slice %470 {offsets = [0, 64], sizes = [8, 32], strides = [1, 1]} : vector<8x96xf32> to vector<8x32xf32>
    %490 = arith.addf %489, %264 : vector<8x32xf32>
    %491 = arith.mulf %479, %490 : vector<8x32xf32>
    %492 = arith.addf %488, %491 : vector<8x32xf32>
    %493 = math.tanh %492 : vector<8x32xf32>
    %cst_100 = arith.constant 1.000000e+00 : f32
    %494 = vector.broadcast %cst_100 : f32 to vector<8x32xf32>
    %495 = arith.subf %494, %487 : vector<8x32xf32>
    %496 = arith.mulf %495, %493 : vector<8x32xf32>
    %497 = arith.mulf %487, %469 : vector<8x32xf32>
    %498 = arith.addf %496, %497 : vector<8x32xf32>
    %c1_101 = arith.constant 1 : index
    %c0_102 = arith.constant 0 : index
    %c0_103 = arith.constant 0 : index
    %499 = vector.load %arg13[%c1_101, %c0_102, %c0_103] : memref<2x8x32xf32, #tpu.memory_space<vmem>>, vector<1x8x32xf32>
    %500 = vector.shape_cast %499 : vector<1x8x32xf32> to vector<8x32xf32>
    %501 = vector.shape_cast %498 : vector<8x32xf32> to vector<1x8x32xf32>
    tpu.vector_store %arg13[%c1_101, %c0_102, %c0_103], %501 {strides = array<i32>} : memref<2x8x32xf32, #tpu.memory_space<vmem>>, vector<1x8x32xf32>,
    %cst_104 = arith.constant 0.000000e+00 : f32
    %502 = vector.broadcast %cst_104 : f32 to vector<8x32xf32>
    %503 = arith.maximumf %498, %502 : vector<8x32xf32>
    %c0_105 = arith.constant 0 : index
    %c0_106 = arith.constant 0 : index
    %504 = vector.load %arg10[%c0_105, %c0_106] : memref<32x128xf32, #tpu.memory_space<vmem>>, vector<32x128xf32>
    %cst_107 = arith.constant dense<0.000000e+00> : vector<8x128xf32>
    %505 = tpu.matmul %503, %504, %cst_107 {dimension_numbers = #tpu.dot_dimension_numbers<[1], [0], [0], [1], [0, 0, 1, 1], [], []>} : vector<8x32xf32>, vector<32x128xf32>, vector<8x128xf32> -> vector<8x128xf32>
    %c0_108 = arith.constant 0 : index
    %c0_109 = arith.constant 0 : index
    %506 = vector.load %arg11[%c0_108, %c0_109] : memref<1x128xf32, #tpu.memory_space<vmem>>, vector<1x128xf32>
    %507 = vector.broadcast %506 : vector<1x128xf32> to vector<8x128xf32>
    %508 = arith.addf %505, %507 : vector<8x128xf32>
    %c0_110 = arith.constant 0 : index
    %c0_111 = arith.constant 0 : index
    %509 = vector.load %arg12[%c0_110, %c0_111] : memref<8x128xf32, #tpu.memory_space<vmem>>, vector<8x128xf32>
    tpu.vector_store %arg12[%c0_110, %c0_111], %508 {strides = array<i32>} : memref<8x128xf32, #tpu.memory_space<vmem>>, vector<8x128xf32>,
    return
  }
}

</mosaic_0001>

<llo_original>
// kernel: tpu_custom_call.1
$region0: #{tpu_custom_call.1}
  #allocation0 [shape = 'u32[]', space=smem, size = 0x4, offset = 0x4, fixed_abs, tag = 'smem constant byte address 0x4 - core index']
  #allocation1 [shape = 'u32[144,128]{1,0:T(1,128)}', space=vmem, size = 0x12000, scoped, tag = 'internal scratch']
  #allocation2 [shape = 'f32[64,32]{1,0:T(8,128)}', space=vmem, size = 0x8000, scoped, tag = 'scratch operand']
  %s0 = inlined_call_operand.vmem [shape: f32[64,16], index: 0, kind: input, shape index: {}]
  %s1 = inlined_call_operand.hbm [shape: f32[2,8,32], index: 1, kind: input, shape index: {}]
  %s2 = inlined_call_operand.hbm [shape: f32[16,96], index: 2, kind: input, shape index: {}]
  %s3 = inlined_call_operand.vmem [shape: f32[32,96], index: 3, kind: input, shape index: {}]
  %s4 = inlined_call_operand.hbm [shape: f32[1,96], index: 4, kind: input, shape index: {}]
  %s5 = inlined_call_operand.hbm [shape: f32[1,32], index: 5, kind: input, shape index: {}]
  %s6 = inlined_call_operand.vmem [shape: f32[32,96], index: 6, kind: input, shape index: {}]
  %s7 = inlined_call_operand.hbm [shape: f32[32,96], index: 7, kind: input, shape index: {}]
  %s8 = inlined_call_operand.hbm [shape: f32[1,96], index: 8, kind: input, shape index: {}]
  %s9 = inlined_call_operand.hbm [shape: f32[1,32], index: 9, kind: input, shape index: {}]
  %s10 = inlined_call_operand.vmem [shape: f32[32,128], index: 10, kind: input, shape index: {}]
  %s11 = inlined_call_operand.vmem [shape: f32[1,128], index: 11, kind: input, shape index: {}]
  %s12 = inlined_call_operand.hbm [shape: f32[8,128], index: 12, kind: output, shape index: {0}]
  %s13 = inlined_call_operand.hbm [shape: f32[2,8,32], index: 13, kind: output, shape index: {1}]
  %14 = xla_tuple %s12, %s13
  %s15 = sld [smem:[#allocation0]]
  $region94: #{tpu_custom_call.1} parent=0
    _
  %s17 = ssub.s32 1, %s15
  %s18 = scalar_select 0, %s17, %s15
  $region1: #{tpu_custom_call.1} parent=0
    #allocation3 [shape = 'u8[8192]{0}', space=vmem, size = 0x2000, scoped, tag = 'input window, operand 1, single buffered']
    #allocation4 [shape = 's32[1]{0}', space=sflag, size = 0x4, scoped, tag = 'scoped memory for tpu_custom_call.1']
    #allocation5 [shape = 's32[1]{0}', space=sflag, size = 0x4, scoped, tag = 'scoped memory for tpu_custom_call.1']
    #allocation6 [shape = 'u8[8192]{0}', space=vmem, size = 0x2000, scoped, tag = 'input window, operand 2, single buffered']
    #allocation7 [shape = 's32[1]{0}', space=sflag, size = 0x4, scoped, tag = 'scoped memory for tpu_custom_call.1']
    #allocation8 [shape = 'u8[512]{0}', space=vmem, size = 0x400, scoped, tag = 'input window, operand 4, single buffered']
    #allocation9 [shape = 'u8[512]{0}', space=vmem, size = 0x400, scoped, tag = 'input window, operand 5, single buffered']
    #allocation10 [shape = 's32[1]{0}', space=sflag, size = 0x4, scoped, tag = 'scoped memory for tpu_custom_call.1']
    #allocation11 [shape = 'u8[16384]{0}', space=vmem, size = 0x4000, scoped, tag = 'input window, operand 7, single buffered']
    #allocation12 [shape = 'u8[512]{0}', space=vmem, size = 0x400, scoped, tag = 'input window, operand 8, single buffered']
    #allocation13 [shape = 's32[1]{0}', space=sflag, size = 0x4, scoped, tag = 'scoped memory for tpu_custom_call.1']
    #allocation14 [shape = 'u8[512]{0}', space=vmem, size = 0x400, scoped, tag = 'input window, operand 9, single buffered']
    #allocation15 [shape = 'u8[4096]{0}', space=vmem, size = 0x1000, scoped, tag = 'output window, operand 0, single buffered']
    #allocation16 [shape = 'u8[8192]{0}', space=vmem, size = 0x2000, scoped, tag = 'output window, operand 1, single buffered']
    #allocation17 [shape = 's32[1]{0}', space=sflag, size = 0x4, scoped, tag = 'scoped memory for tpu_custom_call.1']
    %19 = vsyncpa [#allocation4], 0
    %20 = vsyncpa [#allocation7], 0
    %21 = vsyncpa [#allocation10], 0
    %22 = vsyncpa [#allocation13], 0
    %23 = vsyncpa [#allocation5], 0
    %24 = vsyncpa [#allocation17], 0
    // Predicated region
    $region2: #{tpu_custom_call.1} parent=1 // pred_check
      _
    $region3: #{tpu_custom_call.1} parent=1 // pred_check_branch
      %26 = sbr.rel (0) target = $region5
    $region4: #{tpu_custom_call.1} parent=1 // pred_region
      _
    $region5: #{tpu_custom_call.1} parent=1 // pred_fallthru
      _
    // Predicated region
    $region6: #{tpu_custom_call.1} parent=1 // pred_check
      _
    $region7: #{tpu_custom_call.1} parent=1 // pred_check_branch
      %28 = sbr.rel (0) target = $region9
    $region8: #{tpu_custom_call.1} parent=1 // pred_region
      %s30 = ssub.s32 256, 256
      %31 = vsyncadd [#allocation4], %s30
      %s32 = sshll.u32 [#allocation3], 4
      %s33 = int_to_ptr.vmem [resolvable:$true] %s32
      %38 = dma.hbm_to_vmem [thread:$0]  %s1, 256, %s33, [#allocation4], 128, 128, 8
    $region9: #{tpu_custom_call.1} parent=1 // pred_fallthru
      _
    // Predicated region
    $region10: #{tpu_custom_call.1} parent=1 // pred_check
      _
    $region11: #{tpu_custom_call.1} parent=1 // pred_check_branch
      %40 = sbr.rel (0) target = $region13
    $region12: #{tpu_custom_call.1} parent=1 // pred_region
      %s42 = ssub.s32 256, 256
      %43 = vsyncadd [#allocation7], %s42
      %s44 = sshll.u32 [#allocation6], 4
      %s45 = int_to_ptr.vmem [resolvable:$true] %s44
      %50 = dma.hbm_to_vmem [thread:$0]  %s2, 256, %s45, [#allocation7], 128, 128, 8
    $region13: #{tpu_custom_call.1} parent=1 // pred_fallthru
      _
    // Predicated region
    $region14: #{tpu_custom_call.1} parent=1 // pred_check
      _
    $region15: #{tpu_custom_call.1} parent=1 // pred_check_branch
      %52 = sbr.rel (0) target = $region17
    $region16: #{tpu_custom_call.1} parent=1 // pred_region
      _
    $region17: #{tpu_custom_call.1} parent=1 // pred_fallthru
      _
    // Predicated region
    $region18: #{tpu_custom_call.1} parent=1 // pred_check
      _
    $region19: #{tpu_custom_call.1} parent=1 // pred_check_branch
      %54 = sbr.rel (0) target = $region21
    $region20: #{tpu_custom_call.1} parent=1 // pred_region
      %s56 = ssub.s32 16, 16
      %57 = vsyncadd [#allocation7], %s56
      %s59 = sshll.u32 [#allocation8], 4
      %s60 = int_to_ptr.vmem [resolvable:$true] %s59
      %62 = dma.hbm_to_vmem [thread:$0]  %s4, 16, %s60, [#allocation7]
    $region21: #{tpu_custom_call.1} parent=1 // pred_fallthru
      _
    // Predicated region
    $region22: #{tpu_custom_call.1} parent=1 // pred_check
      _
    $region23: #{tpu_custom_call.1} parent=1 // pred_check_branch
      %64 = sbr.rel (0) target = $region25
    $region24: #{tpu_custom_call.1} parent=1 // pred_region
      %s66 = ssub.s32 16, 16
      %67 = vsyncadd [#allocation10], %s66
      %s69 = sshll.u32 [#allocation9], 4
      %s70 = int_to_ptr.vmem [resolvable:$true] %s69
      %72 = dma.hbm_to_vmem [thread:$0]  %s5, 16, %s70, [#allocation10]
    $region25: #{tpu_custom_call.1} parent=1 // pred_fallthru
      _
    // Predicated region
    $region26: #{tpu_custom_call.1} parent=1 // pred_check
      _
    $region27: #{tpu_custom_call.1} parent=1 // pred_check_branch
      %74 = sbr.rel (0) target = $region29
    $region28: #{tpu_custom_call.1} parent=1 // pred_region
      _
    $region29: #{tpu_custom_call.1} parent=1 // pred_fallthru
      _
    // Predicated region
    $region30: #{tpu_custom_call.1} parent=1 // pred_check
      _
    $region31: #{tpu_custom_call.1} parent=1 // pred_check_branch
      %76 = sbr.rel (0) target = $region33
    $region32: #{tpu_custom_call.1} parent=1 // pred_region
      %s78 = ssub.s32 512, 512
      %79 = vsyncadd [#allocation10], %s78
      %s80 = sshll.u32 [#allocation11], 4
      %s81 = int_to_ptr.vmem [resolvable:$true] %s80
      %86 = dma.hbm_to_vmem [thread:$0]  %s7, 512, %s81, [#allocation10], 128, 128, 8
    $region33: #{tpu_custom_call.1} parent=1 // pred_fallthru
      _
    // Predicated region
    $region34: #{tpu_custom_call.1} parent=1 // pred_check
      _
    $region35: #{tpu_custom_call.1} parent=1 // pred_check_branch
      %88 = sbr.rel (0) target = $region37
    $region36: #{tpu_custom_call.1} parent=1 // pred_region
      %s90 = ssub.s32 16, 16
      %91 = vsyncadd [#allocation13], %s90
      %s93 = sshll.u32 [#allocation12], 4
      %s94 = int_to_ptr.vmem [resolvable:$true] %s93
      %96 = dma.hbm_to_vmem [thread:$0]  %s8, 16, %s94, [#allocation13]
    $region37: #{tpu_custom_call.1} parent=1 // pred_fallthru
      _
    // Predicated region
    $region38: #{tpu_custom_call.1} parent=1 // pred_check
      _
    $region39: #{tpu_custom_call.1} parent=1 // pred_check_branch
      %98 = sbr.rel (0) target = $region41
    $region40: #{tpu_custom_call.1} parent=1 // pred_region
      %s100 = ssub.s32 16, 16
      %101 = vsyncadd [#allocation13], %s100
      %s103 = sshll.u32 [#allocation14], 4
      %s104 = int_to_ptr.vmem [resolvable:$true] %s103
      %106 = dma.hbm_to_vmem [thread:$0]  %s9, 16, %s104, [#allocation13]
    $region41: #{tpu_custom_call.1} parent=1 // pred_fallthru
      _
    // Predicated region
    $region42: #{tpu_custom_call.1} parent=1 // pred_check
      _
    $region43: #{tpu_custom_call.1} parent=1 // pred_check_branch
      %108 = sbr.rel (0) target = $region45
    $region44: #{tpu_custom_call.1} parent=1 // pred_region
      _
    $region45: #{tpu_custom_call.1} parent=1 // pred_fallthru
      _
    // Predicated region
    $region46: #{tpu_custom_call.1} parent=1 // pred_check
      _
    $region47: #{tpu_custom_call.1} parent=1 // pred_check_branch
      %110 = sbr.rel (0) target = $region49
    $region48: #{tpu_custom_call.1} parent=1 // pred_region
      _
    $region49: #{tpu_custom_call.1} parent=1 // pred_fallthru
      _
    // Predicated region
    $region50: #{tpu_custom_call.1} parent=1 // pred_check
      _
    $region51: #{tpu_custom_call.1} parent=1 // pred_check_branch
      %112 = sbr.rel (0) target = $region53
    $region52: #{tpu_custom_call.1} parent=1 // pred_region
      %113 = dma.done [#allocation4], 256
    $region53: #{tpu_custom_call.1} parent=1 // pred_fallthru
      _
    // Predicated region
    $region54: #{tpu_custom_call.1} parent=1 // pred_check
      _
    $region55: #{tpu_custom_call.1} parent=1 // pred_check_branch
      %115 = sbr.rel (0) target = $region57
    $region56: #{tpu_custom_call.1} parent=1 // pred_region
      %116 = dma.done [#allocation7], 256
    $region57: #{tpu_custom_call.1} parent=1 // pred_fallthru
      _
    // Predicated region
    $region58: #{tpu_custom_call.1} parent=1 // pred_check
      _
    $region59: #{tpu_custom_call.1} parent=1 // pred_check_branch
      %118 = sbr.rel (0) target = $region61
    $region60: #{tpu_custom_call.1} parent=1 // pred_region
      %119 = dma.done [#allocation7], 16
    $region61: #{tpu_custom_call.1} parent=1 // pred_fallthru
      _
    // Predicated region
    $region62: #{tpu_custom_call.1} parent=1 // pred_check
      _
    $region63: #{tpu_custom_call.1} parent=1 // pred_check_branch
      %121 = sbr.rel (0) target = $region65
    $region64: #{tpu_custom_call.1} parent=1 // pred_region
      %122 = dma.done [#allocation10], 16
    $region65: #{tpu_custom_call.1} parent=1 // pred_fallthru
      _
    // Predicated region
    $region66: #{tpu_custom_call.1} parent=1 // pred_check
      _
    $region67: #{tpu_custom_call.1} parent=1 // pred_check_branch
      %124 = sbr.rel (0) target = $region69
    $region68: #{tpu_custom_call.1} parent=1 // pred_region
      %125 = dma.done [#allocation10], 512
    $region69: #{tpu_custom_call.1} parent=1 // pred_fallthru
      _
    // Predicated region
    $region70: #{tpu_custom_call.1} parent=1 // pred_check
      _
    $region71: #{tpu_custom_call.1} parent=1 // pred_check_branch
      %127 = sbr.rel (0) target = $region73
    $region72: #{tpu_custom_call.1} parent=1 // pred_region
      %128 = dma.done [#allocation13], 16
    $region73: #{tpu_custom_call.1} parent=1 // pred_fallthru
      _
    // Predicated region
    $region74: #{tpu_custom_call.1} parent=1 // pred_check
      _
    $region75: #{tpu_custom_call.1} parent=1 // pred_check_branch
      %130 = sbr.rel (0) target = $region77
    $region76: #{tpu_custom_call.1} parent=1 // pred_region
      %131 = dma.done [#allocation13], 16
    $region77: #{tpu_custom_call.1} parent=1 // pred_fallthru
      _
    %v132 = vld [vmem:[%s0] sm:$0xff]
    %v133 = vld [vmem:[%s0 + $0x8] sm:$0xff]
    %v134 = vld [vmem:[%s0 + $0x10] sm:$0xff]
    %v135 = vld [vmem:[%s0 + $0x18] sm:$0xff]
    %v136 = vld [vmem:[%s0 + $0x20] sm:$0xff]
    %v137 = vld [vmem:[%s0 + $0x28] sm:$0xff]
    %v138 = vld [vmem:[%s0 + $0x30] sm:$0xff]
    %v139 = vld [vmem:[%s0 + $0x38] sm:$0xff]
    %v140 = vld [vmem:[#allocation6] sm:$0xff]
    %v141 = vld [vmem:[#allocation6 + $0x8] sm:$0xff]
    %v142 = vld [vmem:[#allocation8] sm:$0x1]
    %v144 = vlaneseq
    %v145 = vshrl.u32 %v144, 7
    %v146 = vsub.s32 0, %v145
    %v147 = vrot.slane %v142, %v146
    %vm149 = vcmask 130048
    %v151 = vsel %vm149, %v132, 0
    %v154 = vsel %vm149, %v133, 0
    %v157 = vsel %vm149, %v134, 0
    %v160 = vsel %vm149, %v135, 0
    %v163 = vsel %vm149, %v136, 0
    %v166 = vsel %vm149, %v137, 0
    %v169 = vsel %vm149, %v138, 0
    %v172 = vsel %vm149, %v139, 0
    %174 = vmatprep.subr.mxu0 0.0
    %175 = vmatpush1.msra.mxu0 0.0
    %176 = vmatprep.subr.mxu0 0.0
    %177 = vmatpush1.msra.mxu0 0.0
    %178 = vmatprep.subr.mxu0 0.0
    %179 = vmatpush1.msra.mxu0 0.0
    %180 = vmatprep.subr.mxu0 0.0
    %181 = vmatpush1.msra.mxu0 0.0
    %182 = vmatprep.subr.mxu0 0.0
    %183 = vmatpush1.msra.mxu0 0.0
    %184 = vmatprep.subr.mxu0 0.0
    %185 = vmatpush1.msra.mxu0 0.0
    %186 = vmatprep.subr.mxu0 0.0
    %187 = vmatpush1.msra.mxu0 0.0
    %188 = vmatprep.subr.mxu0 0.0
    %189 = vmatpush1.msra.mxu0 0.0
    %190 = vmatprep.subr.mxu0 0.0
    %191 = vmatpush1.msra.mxu0 0.0
    %192 = vmatprep.subr.mxu0 0.0
    %193 = vmatpush1.msra.mxu0 0.0
    %194 = vmatprep.subr.mxu0 0.0
    %195 = vmatpush1.msra.mxu0 0.0
    %196 = vmatprep.subr.mxu0 0.0
    %197 = vmatpush1.msra.mxu0 0.0
    %198 = vmatprep.subr.mxu0 0.0
    %199 = vmatpush1.msra.mxu0 0.0
    %200 = vmatprep.subr.mxu0 0.0
    %201 = vmatpush1.msra.mxu0 0.0
    %202 = vmatprep.subr.mxu0 0.0
    %203 = vmatpush1.msra.mxu0 %v141
    %204 = vmatprep.subr.mxu0 0.0
    %205 = vmatpush1.msra.mxu0 %v140
    %206 = vmatprep.subr.mxu0 0.0
    %207 = vmatpush2.msra.mxu0 0.0
    %208 = vmatprep.subr.mxu0 0.0
    %209 = vmatpush2.msra.mxu0 0.0
    %210 = vmatprep.subr.mxu0 0.0
    %211 = vmatpush2.msra.mxu0 0.0
    %212 = vmatprep.subr.mxu0 0.0
    %213 = vmatpush2.msra.mxu0 0.0
    %214 = vmatprep.subr.mxu0 0.0
    %215 = vmatpush2.msra.mxu0 0.0
    %216 = vmatprep.subr.mxu0 0.0
    %217 = vmatpush2.msra.mxu0 0.0
    %218 = vmatprep.subr.mxu0 0.0
    %219 = vmatpush2.msra.mxu0 0.0
    %220 = vmatprep.subr.mxu0 0.0
    %221 = vmatpush2.msra.mxu0 0.0
    %222 = vmatprep.subr.mxu0 0.0
    %223 = vmatpush2.msra.mxu0 0.0
    %224 = vmatprep.subr.mxu0 0.0
    %225 = vmatpush2.msra.mxu0 0.0
    %226 = vmatprep.subr.mxu0 0.0
    %227 = vmatpush2.msra.mxu0 0.0
    %228 = vmatprep.subr.mxu0 0.0
    %229 = vmatpush2.msra.mxu0 0.0
    %230 = vmatprep.subr.mxu0 0.0
    %231 = vmatpush2.msra.mxu0 0.0
    %232 = vmatprep.subr.mxu0 0.0
    %233 = vmatpush2.msra.mxu0 0.0
    %234 = vmatprep.subr.mxu0 0.0
    %235 = vmatpush2.msra.mxu0 0.0
    %236 = vmatprep.subr.mxu0 0.0
    %237 = vmatpush2.msra.mxu0 0.0
    %238 = vmatprep.mubr.f32.mxu0 0.0
    %239 = vmatmul.mubr.f32.gmra.mxu0 %v151
    %v240 = vpop.f32.mrf.mxu0
    %v241 = vadd.f32 %v147, %v240
    %v242 = vpop.f32.mrf.mxu0
    %243 = vmatprep.mubr.f32.mxu0 0.0
    %244 = vmatmul.mubr.f32.gmra.mxu0 %v154
    %v245 = vpop.f32.mrf.mxu0
    %v246 = vadd.f32 %v147, %v245
    %v247 = vpop.f32.mrf.mxu0
    %248 = vmatprep.mubr.f32.mxu0 0.0
    %249 = vmatmul.mubr.f32.gmra.mxu0 %v157
    %v250 = vpop.f32.mrf.mxu0
    %v251 = vadd.f32 %v147, %v250
    %v252 = vpop.f32.mrf.mxu0
    %253 = vmatprep.mubr.f32.mxu0 0.0
    %254 = vmatmul.mubr.f32.gmra.mxu0 %v160
    %v255 = vpop.f32.mrf.mxu0
    %v256 = vadd.f32 %v147, %v255
    %v257 = vpop.f32.mrf.mxu0
    %258 = vmatprep.mubr.f32.mxu0 0.0
    %259 = vmatmul.mubr.f32.gmra.mxu0 %v163
    %v260 = vpop.f32.mrf.mxu0
    %v261 = vadd.f32 %v147, %v260
    %v262 = vpop.f32.mrf.mxu0
    %263 = vmatprep.mubr.f32.mxu0 0.0
    %264 = vmatmul.mubr.f32.gmra.mxu0 %v166
    %v265 = vpop.f32.mrf.mxu0
    %v266 = vadd.f32 %v147, %v265
    %v267 = vpop.f32.mrf.mxu0
    %268 = vmatprep.mubr.f32.mxu0 0.0
    %269 = vmatmul.mubr.f32.gmra.mxu0 %v169
    %v270 = vpop.f32.mrf.mxu0
    %v271 = vadd.f32 %v147, %v270
    %v272 = vpop.f32.mrf.mxu0
    %273 = vmatprep.mubr.f32.mxu0 0.0
    %274 = vmatmul.mubr.f32.gmra.mxu0 %v172
    %v275 = vpop.f32.mrf.mxu0
    %v276 = vadd.f32 %v147, %v275
    %v277 = vpop.f32.mrf.mxu0
    %278 = vdwg.mxu0
    %v279 = vld [vmem:[%s3] sm:$0xff]
    %v280 = vld [vmem:[%s3 + $0x8] sm:$0xff]
    %v281 = vld [vmem:[%s3 + $0x10] sm:$0xff]
    %v282 = vld [vmem:[%s3 + $0x18] sm:$0xff]
    %v283 = vld [vmem:[#allocation9] sm:$0x1]
    %v285 = vlaneseq
    %v286 = vshrl.u32 %v285, 7
    %v287 = vsub.s32 0, %v286
    %v288 = vrot.slane %v283, %v287
    %v289 = vld [vmem:[#allocation3] sm:$0xff]
    %vm290 = vcmask 261120
    %v292 = vsel %vm290, %v289, 0
    %294 = vmatprep.subr.mxu0 0.0
    %295 = vmatpush1.msra.mxu0 0.0
    %296 = vmatprep.subr.mxu0 0.0
    %297 = vmatpush1.msra.mxu0 0.0
    %298 = vmatprep.subr.mxu0 0.0
    %299 = vmatpush1.msra.mxu0 0.0
    %300 = vmatprep.subr.mxu0 0.0
    %301 = vmatpush1.msra.mxu0 0.0
    %302 = vmatprep.subr.mxu0 0.0
    %303 = vmatpush1.msra.mxu0 0.0
    %304 = vmatprep.subr.mxu0 0.0
    %305 = vmatpush1.msra.mxu0 0.0
    %306 = vmatprep.subr.mxu0 0.0
    %307 = vmatpush1.msra.mxu0 0.0
    %308 = vmatprep.subr.mxu0 0.0
    %309 = vmatpush1.msra.mxu0 0.0
    %310 = vmatprep.subr.mxu0 0.0
    %311 = vmatpush1.msra.mxu0 0.0
    %312 = vmatprep.subr.mxu0 0.0
    %313 = vmatpush1.msra.mxu0 0.0
    %314 = vmatprep.subr.mxu0 0.0
    %315 = vmatpush1.msra.mxu0 0.0
    %316 = vmatprep.subr.mxu0 0.0
    %317 = vmatpush1.msra.mxu0 0.0
    %318 = vmatprep.subr.mxu0 0.0
    %319 = vmatpush1.msra.mxu0 %v282
    %320 = vmatprep.subr.mxu0 0.0
    %321 = vmatpush1.msra.mxu0 %v281
    %322 = vmatprep.subr.mxu0 0.0
    %323 = vmatpush1.msra.mxu0 %v280
    %324 = vmatprep.subr.mxu0 0.0
    %325 = vmatpush1.msra.mxu0 %v279
    %326 = vmatprep.subr.mxu0 0.0
    %327 = vmatpush2.msra.mxu0 0.0
    %328 = vmatprep.subr.mxu0 0.0
    %329 = vmatpush2.msra.mxu0 0.0
    %330 = vmatprep.subr.mxu0 0.0
    %331 = vmatpush2.msra.mxu0 0.0
    %332 = vmatprep.subr.mxu0 0.0
    %333 = vmatpush2.msra.mxu0 0.0
    %334 = vmatprep.subr.mxu0 0.0
    %335 = vmatpush2.msra.mxu0 0.0
    %336 = vmatprep.subr.mxu0 0.0
    %337 = vmatpush2.msra.mxu0 0.0
    %338 = vmatprep.subr.mxu0 0.0
    %339 = vmatpush2.msra.mxu0 0.0
    %340 = vmatprep.subr.mxu0 0.0
    %341 = vmatpush2.msra.mxu0 0.0
    %342 = vmatprep.subr.mxu0 0.0
    %343 = vmatpush2.msra.mxu0 0.0
    %344 = vmatprep.subr.mxu0 0.0
    %345 = vmatpush2.msra.mxu0 0.0
    %346 = vmatprep.subr.mxu0 0.0
    %347 = vmatpush2.msra.mxu0 0.0
    %348 = vmatprep.subr.mxu0 0.0
    %349 = vmatpush2.msra.mxu0 0.0
    %350 = vmatprep.subr.mxu0 0.0
    %351 = vmatpush2.msra.mxu0 0.0
    %352 = vmatprep.subr.mxu0 0.0
    %353 = vmatpush2.msra.mxu0 0.0
    %354 = vmatprep.subr.mxu0 0.0
    %355 = vmatpush2.msra.mxu0 0.0
    %356 = vmatprep.subr.mxu0 0.0
    %357 = vmatpush2.msra.mxu0 0.0
    %358 = vmatprep.mubr.f32.mxu0 0.0
    %359 = vmatmul.mubr.f32.gmra.mxu0 %v292
    %v360 = vpop.f32.mrf.mxu0
    %v361 = vadd.f32 0.0, %v360
    %v362 = vpop.f32.mrf.mxu0
    %363 = vdwg.mxu0
    %v364 = vadd.f32 %v241, %v361
    %v365 = vxor.u32 %v364, 2147483648
    %v366 = vmul.f32 %v365, 1.442695
    %v367 = vpow.pop %v366
    %v368 = vadd.f32 %v367, 1.0
    %v369 = vrcp.pop %v368
    %v370 = vmul.f32 1.0, %v369
    %371 = vrot.lane.b32.xlu0 %v288, 64
    %v372 = vpop.permute.xlu0 %371
    %v374 = vadd.f32 %v361, %v372
    %376 = vrot.lane.b32.xlu0 %v374, 64
    %v377 = vpop.permute.xlu0 %376
    %v379 = vmul.f32 %v370, %v377
    %381 = vrot.lane.b32.xlu0 %v379, 64
    %v382 = vpop.permute.xlu0 %381
    %v384 = vadd.f32 %v241, %v382
    %v385 = vtanh.pop %v384
    %v386 = vsub.f32 1.0, %v370
    %388 = vrot.lane.b32.xlu0 %v385, 96
    %v389 = vpop.permute.xlu0 %388
    %v391 = vmul.f32 %v386, %v389
    %392 = vrot.lane.b32.xlu0 %v289, 32
    %v393 = vpop.permute.xlu0 %392
    %v395 = vmul.f32 %v370, %v393
    %v396 = vadd.f32 %v391, %v395
    %398 = vrot.lane.b32.xlu0 %v396, 96
    %v399 = vpop.permute.xlu0 %398
    %401 = vst.msk [vmem:[#allocation2] sm:$0xff] %vm290, %v399
    %v402 = vsel %vm290, %v399, 0
    %404 = vmatprep.subr.mxu0 0.0
    %405 = vmatpush1.msra.mxu0 0.0
    %406 = vmatprep.subr.mxu0 0.0
    %407 = vmatpush1.msra.mxu0 0.0
    %408 = vmatprep.subr.mxu0 0.0
    %409 = vmatpush1.msra.mxu0 0.0
    %410 = vmatprep.subr.mxu0 0.0
    %411 = vmatpush1.msra.mxu0 0.0
    %412 = vmatprep.subr.mxu0 0.0
    %413 = vmatpush1.msra.mxu0 0.0
    %414 = vmatprep.subr.mxu0 0.0
    %415 = vmatpush1.msra.mxu0 0.0
    %416 = vmatprep.subr.mxu0 0.0
    %417 = vmatpush1.msra.mxu0 0.0
    %418 = vmatprep.subr.mxu0 0.0
    %419 = vmatpush1.msra.mxu0 0.0
    %420 = vmatprep.subr.mxu0 0.0
    %421 = vmatpush1.msra.mxu0 0.0
    %422 = vmatprep.subr.mxu0 0.0
    %423 = vmatpush1.msra.mxu0 0.0
    %424 = vmatprep.subr.mxu0 0.0
    %425 = vmatpush1.msra.mxu0 0.0
    %426 = vmatprep.subr.mxu0 0.0
    %427 = vmatpush1.msra.mxu0 0.0
    %428 = vmatprep.subr.mxu0 0.0
    %429 = vmatpush1.msra.mxu0 %v282
    %430 = vmatprep.subr.mxu0 0.0
    %431 = vmatpush1.msra.mxu0 %v281
    %432 = vmatprep.subr.mxu0 0.0
    %433 = vmatpush1.msra.mxu0 %v280
    %434 = vmatprep.subr.mxu0 0.0
    %435 = vmatpush1.msra.mxu0 %v279
    %436 = vmatprep.subr.mxu0 0.0
    %437 = vmatpush2.msra.mxu0 0.0
    %438 = vmatprep.subr.mxu0 0.0
    %439 = vmatpush2.msra.mxu0 0.0
    %440 = vmatprep.subr.mxu0 0.0
    %441 = vmatpush2.msra.mxu0 0.0
    %442 = vmatprep.subr.mxu0 0.0
    %443 = vmatpush2.msra.mxu0 0.0
    %444 = vmatprep.subr.mxu0 0.0
    %445 = vmatpush2.msra.mxu0 0.0
    %446 = vmatprep.subr.mxu0 0.0
    %447 = vmatpush2.msra.mxu0 0.0
    %448 = vmatprep.subr.mxu0 0.0
    %449 = vmatpush2.msra.mxu0 0.0
    %450 = vmatprep.subr.mxu0 0.0
    %451 = vmatpush2.msra.mxu0 0.0
    %452 = vmatprep.subr.mxu0 0.0
    %453 = vmatpush2.msra.mxu0 0.0
    %454 = vmatprep.subr.mxu0 0.0
    %455 = vmatpush2.msra.mxu0 0.0
    %456 = vmatprep.subr.mxu0 0.0
    %457 = vmatpush2.msra.mxu0 0.0
    %458 = vmatprep.subr.mxu0 0.0
    %459 = vmatpush2.msra.mxu0 0.0
    %460 = vmatprep.subr.mxu0 0.0
    %461 = vmatpush2.msra.mxu0 0.0
    %462 = vmatprep.subr.mxu0 0.0
    %463 = vmatpush2.msra.mxu0 0.0
    %464 = vmatprep.subr.mxu0 0.0
    %465 = vmatpush2.msra.mxu0 0.0
    %466 = vmatprep.subr.mxu0 0.0
    %467 = vmatpush2.msra.mxu0 0.0
    %468 = vmatprep.mubr.f32.mxu0 0.0
    %469 = vmatmul.mubr.f32.gmra.mxu0 %v402
    %v470 = vpop.f32.mrf.mxu0
    %v471 = vadd.f32 0.0, %v470
    %v472 = vpop.f32.mrf.mxu0
    %473 = vdwg.mxu0
    %v474 = vadd.f32 %v246, %v471
    %v475 = vxor.u32 %v474, 2147483648
    %v476 = vmul.f32 %v475, 1.442695
    %v477 = vpow.pop %v476
    %v478 = vadd.f32 %v477, 1.0
    %v479 = vrcp.pop %v478
    %v480 = vmul.f32 1.0, %v479
    %v481 = vadd.f32 %v471, %v372
    %483 = vrot.lane.b32.xlu0 %v481, 64
    %v484 = vpop.permute.xlu0 %483
    %v486 = vmul.f32 %v480, %v484
    %488 = vrot.lane.b32.xlu0 %v486, 64
    %v489 = vpop.permute.xlu0 %488
    %v491 = vadd.f32 %v246, %v489
    %v492 = vtanh.pop %v491
    %v493 = vsub.f32 1.0, %v480
    %495 = vrot.lane.b32.xlu0 %v492, 96
    %v496 = vpop.permute.xlu0 %495
    %v498 = vmul.f32 %v493, %v496
    %v499 = vmul.f32 %v480, %v396
    %v500 = vadd.f32 %v498, %v499
    %502 = vrot.lane.b32.xlu0 %v500, 96
    %v503 = vpop.permute.xlu0 %502
    %505 = vst.msk [vmem:[#allocation2 + $0x8] sm:$0xff] %vm290, %v503
    %v506 = vsel %vm290, %v503, 0
    %508 = vmatprep.subr.mxu0 0.0
    %509 = vmatpush1.msra.mxu0 0.0
    %510 = vmatprep.subr.mxu0 0.0
    %511 = vmatpush1.msra.mxu0 0.0
    %512 = vmatprep.subr.mxu0 0.0
    %513 = vmatpush1.msra.mxu0 0.0
    %514 = vmatprep.subr.mxu0 0.0
    %515 = vmatpush1.msra.mxu0 0.0
    %516 = vmatprep.subr.mxu0 0.0
    %517 = vmatpush1.msra.mxu0 0.0
    %518 = vmatprep.subr.mxu0 0.0
    %519 = vmatpush1.msra.mxu0 0.0
    %520 = vmatprep.subr.mxu0 0.0
    %521 = vmatpush1.msra.mxu0 0.0
    %522 = vmatprep.subr.mxu0 0.0
    %523 = vmatpush1.msra.mxu0 0.0
    %524 = vmatprep.subr.mxu0 0.0
    %525 = vmatpush1.msra.mxu0 0.0
    %526 = vmatprep.subr.mxu0 0.0
    %527 = vmatpush1.msra.mxu0 0.0
    %528 = vmatprep.subr.mxu0 0.0
    %529 = vmatpush1.msra.mxu0 0.0
    %530 = vmatprep.subr.mxu0 0.0
    %531 = vmatpush1.msra.mxu0 0.0
    %532 = vmatprep.subr.mxu0 0.0
    %533 = vmatpush1.msra.mxu0 %v282
    %534 = vmatprep.subr.mxu0 0.0
    %535 = vmatpush1.msra.mxu0 %v281
    %536 = vmatprep.subr.mxu0 0.0
    %537 = vmatpush1.msra.mxu0 %v280
    %538 = vmatprep.subr.mxu0 0.0
    %539 = vmatpush1.msra.mxu0 %v279
    %540 = vmatprep.subr.mxu0 0.0
    %541 = vmatpush2.msra.mxu0 0.0
    %542 = vmatprep.subr.mxu0 0.0
    %543 = vmatpush2.msra.mxu0 0.0
    %544 = vmatprep.subr.mxu0 0.0
    %545 = vmatpush2.msra.mxu0 0.0
    %546 = vmatprep.subr.mxu0 0.0
    %547 = vmatpush2.msra.mxu0 0.0
    %548 = vmatprep.subr.mxu0 0.0
    %549 = vmatpush2.msra.mxu0 0.0
    %550 = vmatprep.subr.mxu0 0.0
    %551 = vmatpush2.msra.mxu0 0.0
    %552 = vmatprep.subr.mxu0 0.0
    %553 = vmatpush2.msra.mxu0 0.0
    %554 = vmatprep.subr.mxu0 0.0
    %555 = vmatpush2.msra.mxu0 0.0
    %556 = vmatprep.subr.mxu0 0.0
    %557 = vmatpush2.msra.mxu0 0.0
    %558 = vmatprep.subr.mxu0 0.0
    %559 = vmatpush2.msra.mxu0 0.0
    %560 = vmatprep.subr.mxu0 0.0
    %561 = vmatpush2.msra.mxu0 0.0
    %562 = vmatprep.subr.mxu0 0.0
    %563 = vmatpush2.msra.mxu0 0.0
    %564 = vmatprep.subr.mxu0 0.0
    %565 = vmatpush2.msra.mxu0 0.0
    %566 = vmatprep.subr.mxu0 0.0
    %567 = vmatpush2.msra.mxu0 0.0
    %568 = vmatprep.subr.mxu0 0.0
    %569 = vmatpush2.msra.mxu0 0.0
    %570 = vmatprep.subr.mxu0 0.0
    %571 = vmatpush2.msra.mxu0 0.0
    %572 = vmatprep.mubr.f32.mxu0 0.0
    %573 = vmatmul.mubr.f32.gmra.mxu0 %v506
    %v574 = vpop.f32.mrf.mxu0
    %v575 = vadd.f32 0.0, %v574
    %v576 = vpop.f32.mrf.mxu0
    %577 = vdwg.mxu0
    %v578 = vadd.f32 %v251, %v575
    %v579 = vxor.u32 %v578, 2147483648
    %v580 = vmul.f32 %v579, 1.442695
    %v581 = vpow.pop %v580
    %v582 = vadd.f32 %v581, 1.0
    %v583 = vrcp.pop %v582
    %v584 = vmul.f32 1.0, %v583
    %v585 = vadd.f32 %v575, %v372
    %587 = vrot.lane.b32.xlu0 %v585, 64
    %v588 = vpop.permute.xlu0 %587
    %v590 = vmul.f32 %v584, %v588
    %592 = vrot.lane.b32.xlu0 %v590, 64
    %v593 = vpop.permute.xlu0 %592
    %v595 = vadd.f32 %v251, %v593
    %v596 = vtanh.pop %v595
    %v597 = vsub.f32 1.0, %v584
    %599 = vrot.lane.b32.xlu0 %v596, 96
    %v600 = vpop.permute.xlu0 %599
    %v602 = vmul.f32 %v597, %v600
    %v603 = vmul.f32 %v584, %v500
    %v604 = vadd.f32 %v602, %v603
    %606 = vrot.lane.b32.xlu0 %v604, 96
    %v607 = vpop.permute.xlu0 %606
    %609 = vst.msk [vmem:[#allocation2 + $0x10] sm:$0xff] %vm290, %v607
    %v610 = vsel %vm290, %v607, 0
    %612 = vmatprep.subr.mxu0 0.0
    %613 = vmatpush1.msra.mxu0 0.0
    %614 = vmatprep.subr.mxu0 0.0
    %615 = vmatpush1.msra.mxu0 0.0
    %616 = vmatprep.subr.mxu0 0.0
    %617 = vmatpush1.msra.mxu0 0.0
    %618 = vmatprep.subr.mxu0 0.0
    %619 = vmatpush1.msra.mxu0 0.0
    %620 = vmatprep.subr.mxu0 0.0
    %621 = vmatpush1.msra.mxu0 0.0
    %622 = vmatprep.subr.mxu0 0.0
    %623 = vmatpush1.msra.mxu0 0.0
    %624 = vmatprep.subr.mxu0 0.0
    %625 = vmatpush1.msra.mxu0 0.0
    %626 = vmatprep.subr.mxu0 0.0
    %627 = vmatpush1.msra.mxu0 0.0
    %628 = vmatprep.subr.mxu0 0.0
    %629 = vmatpush1.msra.mxu0 0.0
    %630 = vmatprep.subr.mxu0 0.0
    %631 = vmatpush1.msra.mxu0 0.0
    %632 = vmatprep.subr.mxu0 0.0
    %633 = vmatpush1.msra.mxu0 0.0
    %634 = vmatprep.subr.mxu0 0.0
    %635 = vmatpush1.msra.mxu0 0.0
    %636 = vmatprep.subr.mxu0 0.0
    %637 = vmatpush1.msra.mxu0 %v282
    %638 = vmatprep.subr.mxu0 0.0
    %639 = vmatpush1.msra.mxu0 %v281
    %640 = vmatprep.subr.mxu0 0.0
    %641 = vmatpush1.msra.mxu0 %v280
    %642 = vmatprep.subr.mxu0 0.0
    %643 = vmatpush1.msra.mxu0 %v279
    %644 = vmatprep.subr.mxu0 0.0
    %645 = vmatpush2.msra.mxu0 0.0
    %646 = vmatprep.subr.mxu0 0.0
    %647 = vmatpush2.msra.mxu0 0.0
    %648 = vmatprep.subr.mxu0 0.0
    %649 = vmatpush2.msra.mxu0 0.0
    %650 = vmatprep.subr.mxu0 0.0
    %651 = vmatpush2.msra.mxu0 0.0
    %652 = vmatprep.subr.mxu0 0.0
    %653 = vmatpush2.msra.mxu0 0.0
    %654 = vmatprep.subr.mxu0 0.0
    %655 = vmatpush2.msra.mxu0 0.0
    %656 = vmatprep.subr.mxu0 0.0
    %657 = vmatpush2.msra.mxu0 0.0
    %658 = vmatprep.subr.mxu0 0.0
    %659 = vmatpush2.msra.mxu0 0.0
    %660 = vmatprep.subr.mxu0 0.0
    %661 = vmatpush2.msra.mxu0 0.0
    %662 = vmatprep.subr.mxu0 0.0
    %663 = vmatpush2.msra.mxu0 0.0
    %664 = vmatprep.subr.mxu0 0.0
    %665 = vmatpush2.msra.mxu0 0.0
    %666 = vmatprep.subr.mxu0 0.0
    %667 = vmatpush2.msra.mxu0 0.0
    %668 = vmatprep.subr.mxu0 0.0
    %669 = vmatpush2.msra.mxu0 0.0
    %670 = vmatprep.subr.mxu0 0.0
    %671 = vmatpush2.msra.mxu0 0.0
    %672 = vmatprep.subr.mxu0 0.0
    %673 = vmatpush2.msra.mxu0 0.0
    %674 = vmatprep.subr.mxu0 0.0
    %675 = vmatpush2.msra.mxu0 0.0
    %676 = vmatprep.mubr.f32.mxu0 0.0
    %677 = vmatmul.mubr.f32.gmra.mxu0 %v610
    %v678 = vpop.f32.mrf.mxu0
    %v679 = vadd.f32 0.0, %v678
    %v680 = vpop.f32.mrf.mxu0
    %681 = vdwg.mxu0
    %v682 = vadd.f32 %v256, %v679
    %v683 = vxor.u32 %v682, 2147483648
    %v684 = vmul.f32 %v683, 1.442695
    %v685 = vpow.pop %v684
    %v686 = vadd.f32 %v685, 1.0
    %v687 = vrcp.pop %v686
    %v688 = vmul.f32 1.0, %v687
    %v689 = vadd.f32 %v679, %v372
    %691 = vrot.lane.b32.xlu0 %v689, 64
    %v692 = vpop.permute.xlu0 %691
    %v694 = vmul.f32 %v688, %v692
    %696 = vrot.lane.b32.xlu0 %v694, 64
    %v697 = vpop.permute.xlu0 %696
    %v699 = vadd.f32 %v256, %v697
    %v700 = vtanh.pop %v699
    %v701 = vsub.f32 1.0, %v688
    %703 = vrot.lane.b32.xlu0 %v700, 96
    %v704 = vpop.permute.xlu0 %703
    %v706 = vmul.f32 %v701, %v704
    %v707 = vmul.f32 %v688, %v604
    %v708 = vadd.f32 %v706, %v707
    %710 = vrot.lane.b32.xlu0 %v708, 96
    %v711 = vpop.permute.xlu0 %710
    %713 = vst.msk [vmem:[#allocation2 + $0x18] sm:$0xff] %vm290, %v711
    %v714 = vsel %vm290, %v711, 0
    %716 = vmatprep.subr.mxu0 0.0
    %717 = vmatpush1.msra.mxu0 0.0
    %718 = vmatprep.subr.mxu0 0.0
    %719 = vmatpush1.msra.mxu0 0.0
    %720 = vmatprep.subr.mxu0 0.0
    %721 = vmatpush1.msra.mxu0 0.0
    %722 = vmatprep.subr.mxu0 0.0
    %723 = vmatpush1.msra.mxu0 0.0
    %724 = vmatprep.subr.mxu0 0.0
    %725 = vmatpush1.msra.mxu0 0.0
    %726 = vmatprep.subr.mxu0 0.0
    %727 = vmatpush1.msra.mxu0 0.0
    %728 = vmatprep.subr.mxu0 0.0
    %729 = vmatpush1.msra.mxu0 0.0
    %730 = vmatprep.subr.mxu0 0.0
    %731 = vmatpush1.msra.mxu0 0.0
    %732 = vmatprep.subr.mxu0 0.0
    %733 = vmatpush1.msra.mxu0 0.0
    %734 = vmatprep.subr.mxu0 0.0
    %735 = vmatpush1.msra.mxu0 0.0
    %736 = vmatprep.subr.mxu0 0.0
    %737 = vmatpush1.msra.mxu0 0.0
    %738 = vmatprep.subr.mxu0 0.0
    %739 = vmatpush1.msra.mxu0 0.0
    %740 = vmatprep.subr.mxu0 0.0
    %741 = vmatpush1.msra.mxu0 %v282
    %742 = vmatprep.subr.mxu0 0.0
    %743 = vmatpush1.msra.mxu0 %v281
    %744 = vmatprep.subr.mxu0 0.0
    %745 = vmatpush1.msra.mxu0 %v280
    %746 = vmatprep.subr.mxu0 0.0
    %747 = vmatpush1.msra.mxu0 %v279
    %748 = vmatprep.subr.mxu0 0.0
    %749 = vmatpush2.msra.mxu0 0.0
    %750 = vmatprep.subr.mxu0 0.0
    %751 = vmatpush2.msra.mxu0 0.0
    %752 = vmatprep.subr.mxu0 0.0
    %753 = vmatpush2.msra.mxu0 0.0
    %754 = vmatprep.subr.mxu0 0.0
    %755 = vmatpush2.msra.mxu0 0.0
    %756 = vmatprep.subr.mxu0 0.0
    %757 = vmatpush2.msra.mxu0 0.0
    %758 = vmatprep.subr.mxu0 0.0
    %759 = vmatpush2.msra.mxu0 0.0
    %760 = vmatprep.subr.mxu0 0.0
    %761 = vmatpush2.msra.mxu0 0.0
    %762 = vmatprep.subr.mxu0 0.0
    %763 = vmatpush2.msra.mxu0 0.0
    %764 = vmatprep.subr.mxu0 0.0
    %765 = vmatpush2.msra.mxu0 0.0
    %766 = vmatprep.subr.mxu0 0.0
    %767 = vmatpush2.msra.mxu0 0.0
    %768 = vmatprep.subr.mxu0 0.0
    %769 = vmatpush2.msra.mxu0 0.0
    %770 = vmatprep.subr.mxu0 0.0
    %771 = vmatpush2.msra.mxu0 0.0
    %772 = vmatprep.subr.mxu0 0.0
    %773 = vmatpush2.msra.mxu0 0.0
    %774 = vmatprep.subr.mxu0 0.0
    %775 = vmatpush2.msra.mxu0 0.0
    %776 = vmatprep.subr.mxu0 0.0
    %777 = vmatpush2.msra.mxu0 0.0
    %778 = vmatprep.subr.mxu0 0.0
    %779 = vmatpush2.msra.mxu0 0.0
    %780 = vmatprep.mubr.f32.mxu0 0.0
    %781 = vmatmul.mubr.f32.gmra.mxu0 %v714
    %v782 = vpop.f32.mrf.mxu0
    %v783 = vadd.f32 0.0, %v782
    %v784 = vpop.f32.mrf.mxu0
    %785 = vdwg.mxu0
    %v786 = vadd.f32 %v261, %v783
    %v787 = vxor.u32 %v786, 2147483648
    %v788 = vmul.f32 %v787, 1.442695
    %v789 = vpow.pop %v788
    %v790 = vadd.f32 %v789, 1.0
    %v791 = vrcp.pop %v790
    %v792 = vmul.f32 1.0, %v791
    %v793 = vadd.f32 %v783, %v372
    %795 = vrot.lane.b32.xlu0 %v793, 64
    %v796 = vpop.permute.xlu0 %795
    %v798 = vmul.f32 %v792, %v796
    %800 = vrot.lane.b32.xlu0 %v798, 64
    %v801 = vpop.permute.xlu0 %800
    %v803 = vadd.f32 %v261, %v801
    %v804 = vtanh.pop %v803
    %v805 = vsub.f32 1.0, %v792
    %807 = vrot.lane.b32.xlu0 %v804, 96
    %v808 = vpop.permute.xlu0 %807
    %v810 = vmul.f32 %v805, %v808
    %v811 = vmul.f32 %v792, %v708
    %v812 = vadd.f32 %v810, %v811
    %814 = vrot.lane.b32.xlu0 %v812, 96
    %v815 = vpop.permute.xlu0 %814
    %817 = vst.msk [vmem:[#allocation2 + $0x20] sm:$0xff] %vm290, %v815
    %v818 = vsel %vm290, %v815, 0
    %820 = vmatprep.subr.mxu0 0.0
    %821 = vmatpush1.msra.mxu0 0.0
    %822 = vmatprep.subr.mxu0 0.0
    %823 = vmatpush1.msra.mxu0 0.0
    %824 = vmatprep.subr.mxu0 0.0
    %825 = vmatpush1.msra.mxu0 0.0
    %826 = vmatprep.subr.mxu0 0.0
    %827 = vmatpush1.msra.mxu0 0.0
    %828 = vmatprep.subr.mxu0 0.0
    %829 = vmatpush1.msra.mxu0 0.0
    %830 = vmatprep.subr.mxu0 0.0
    %831 = vmatpush1.msra.mxu0 0.0
    %832 = vmatprep.subr.mxu0 0.0
    %833 = vmatpush1.msra.mxu0 0.0
    %834 = vmatprep.subr.mxu0 0.0
    %835 = vmatpush1.msra.mxu0 0.0
    %836 = vmatprep.subr.mxu0 0.0
    %837 = vmatpush1.msra.mxu0 0.0
    %838 = vmatprep.subr.mxu0 0.0
    %839 = vmatpush1.msra.mxu0 0.0
    %840 = vmatprep.subr.mxu0 0.0
    %841 = vmatpush1.msra.mxu0 0.0
    %842 = vmatprep.subr.mxu0 0.0
    %843 = vmatpush1.msra.mxu0 0.0
    %844 = vmatprep.subr.mxu0 0.0
    %845 = vmatpush1.msra.mxu0 %v282
    %846 = vmatprep.subr.mxu0 0.0
    %847 = vmatpush1.msra.mxu0 %v281
    %848 = vmatprep.subr.mxu0 0.0
    %849 = vmatpush1.msra.mxu0 %v280
    %850 = vmatprep.subr.mxu0 0.0
    %851 = vmatpush1.msra.mxu0 %v279
    %852 = vmatprep.subr.mxu0 0.0
    %853 = vmatpush2.msra.mxu0 0.0
    %854 = vmatprep.subr.mxu0 0.0
    %855 = vmatpush2.msra.mxu0 0.0
    %856 = vmatprep.subr.mxu0 0.0
    %857 = vmatpush2.msra.mxu0 0.0
    %858 = vmatprep.subr.mxu0 0.0
    %859 = vmatpush2.msra.mxu0 0.0
    %860 = vmatprep.subr.mxu0 0.0
    %861 = vmatpush2.msra.mxu0 0.0
    %862 = vmatprep.subr.mxu0 0.0
    %863 = vmatpush2.msra.mxu0 0.0
    %864 = vmatprep.subr.mxu0 0.0
    %865 = vmatpush2.msra.mxu0 0.0
    %866 = vmatprep.subr.mxu0 0.0
    %867 = vmatpush2.msra.mxu0 0.0
    %868 = vmatprep.subr.mxu0 0.0
    %869 = vmatpush2.msra.mxu0 0.0
    %870 = vmatprep.subr.mxu0 0.0
    %871 = vmatpush2.msra.mxu0 0.0
    %872 = vmatprep.subr.mxu0 0.0
    %873 = vmatpush2.msra.mxu0 0.0
    %874 = vmatprep.subr.mxu0 0.0
    %875 = vmatpush2.msra.mxu0 0.0
    %876 = vmatprep.subr.mxu0 0.0
    %877 = vmatpush2.msra.mxu0 0.0
    %878 = vmatprep.subr.mxu0 0.0
    %879 = vmatpush2.msra.mxu0 0.0
    %880 = vmatprep.subr.mxu0 0.0
    %881 = vmatpush2.msra.mxu0 0.0
    %882 = vmatprep.subr.mxu0 0.0
    %883 = vmatpush2.msra.mxu0 0.0
    %884 = vmatprep.mubr.f32.mxu0 0.0
    %885 = vmatmul.mubr.f32.gmra.mxu0 %v818
    %v886 = vpop.f32.mrf.mxu0
    %v887 = vadd.f32 0.0, %v886
    %v888 = vpop.f32.mrf.mxu0
    %889 = vdwg.mxu0
    %v890 = vadd.f32 %v266, %v887
    %v891 = vxor.u32 %v890, 2147483648
    %v892 = vmul.f32 %v891, 1.442695
    %v893 = vpow.pop %v892
    %v894 = vadd.f32 %v893, 1.0
    %v895 = vrcp.pop %v894
    %v896 = vmul.f32 1.0, %v895
    %v897 = vadd.f32 %v887, %v372
    %899 = vrot.lane.b32.xlu0 %v897, 64
    %v900 = vpop.permute.xlu0 %899
    %v902 = vmul.f32 %v896, %v900
    %904 = vrot.lane.b32.xlu0 %v902, 64
    %v905 = vpop.permute.xlu0 %904
    %v907 = vadd.f32 %v266, %v905
    %v908 = vtanh.pop %v907
    %v909 = vsub.f32 1.0, %v896
    %911 = vrot.lane.b32.xlu0 %v908, 96
    %v912 = vpop.permute.xlu0 %911
    %v914 = vmul.f32 %v909, %v912
    %v915 = vmul.f32 %v896, %v812
    %v916 = vadd.f32 %v914, %v915
    %918 = vrot.lane.b32.xlu0 %v916, 96
    %v919 = vpop.permute.xlu0 %918
    %921 = vst.msk [vmem:[#allocation2 + $0x28] sm:$0xff] %vm290, %v919
    %v922 = vsel %vm290, %v919, 0
    %924 = vmatprep.subr.mxu0 0.0
    %925 = vmatpush1.msra.mxu0 0.0
    %926 = vmatprep.subr.mxu0 0.0
    %927 = vmatpush1.msra.mxu0 0.0
    %928 = vmatprep.subr.mxu0 0.0
    %929 = vmatpush1.msra.mxu0 0.0
    %930 = vmatprep.subr.mxu0 0.0
    %931 = vmatpush1.msra.mxu0 0.0
    %932 = vmatprep.subr.mxu0 0.0
    %933 = vmatpush1.msra.mxu0 0.0
    %934 = vmatprep.subr.mxu0 0.0
    %935 = vmatpush1.msra.mxu0 0.0
    %936 = vmatprep.subr.mxu0 0.0
    %937 = vmatpush1.msra.mxu0 0.0
    %938 = vmatprep.subr.mxu0 0.0
    %939 = vmatpush1.msra.mxu0 0.0
    %940 = vmatprep.subr.mxu0 0.0
    %941 = vmatpush1.msra.mxu0 0.0
    %942 = vmatprep.subr.mxu0 0.0
    %943 = vmatpush1.msra.mxu0 0.0
    %944 = vmatprep.subr.mxu0 0.0
    %945 = vmatpush1.msra.mxu0 0.0
    %946 = vmatprep.subr.mxu0 0.0
    %947 = vmatpush1.msra.mxu0 0.0
    %948 = vmatprep.subr.mxu0 0.0
    %949 = vmatpush1.msra.mxu0 %v282
    %950 = vmatprep.subr.mxu0 0.0
    %951 = vmatpush1.msra.mxu0 %v281
    %952 = vmatprep.subr.mxu0 0.0
    %953 = vmatpush1.msra.mxu0 %v280
    %954 = vmatprep.subr.mxu0 0.0
    %955 = vmatpush1.msra.mxu0 %v279
    %956 = vmatprep.subr.mxu0 0.0
    %957 = vmatpush2.msra.mxu0 0.0
    %958 = vmatprep.subr.mxu0 0.0
    %959 = vmatpush2.msra.mxu0 0.0
    %960 = vmatprep.subr.mxu0 0.0
    %961 = vmatpush2.msra.mxu0 0.0
    %962 = vmatprep.subr.mxu0 0.0
    %963 = vmatpush2.msra.mxu0 0.0
    %964 = vmatprep.subr.mxu0 0.0
    %965 = vmatpush2.msra.mxu0 0.0
    %966 = vmatprep.subr.mxu0 0.0
    %967 = vmatpush2.msra.mxu0 0.0
    %968 = vmatprep.subr.mxu0 0.0
    %969 = vmatpush2.msra.mxu0 0.0
    %970 = vmatprep.subr.mxu0 0.0
    %971 = vmatpush2.msra.mxu0 0.0
    %972 = vmatprep.subr.mxu0 0.0
    %973 = vmatpush2.msra.mxu0 0.0
    %974 = vmatprep.subr.mxu0 0.0
    %975 = vmatpush2.msra.mxu0 0.0
    %976 = vmatprep.subr.mxu0 0.0
    %977 = vmatpush2.msra.mxu0 0.0
    %978 = vmatprep.subr.mxu0 0.0
    %979 = vmatpush2.msra.mxu0 0.0
    %980 = vmatprep.subr.mxu0 0.0
    %981 = vmatpush2.msra.mxu0 0.0
    %982 = vmatprep.subr.mxu0 0.0
    %983 = vmatpush2.msra.mxu0 0.0
    %984 = vmatprep.subr.mxu0 0.0
    %985 = vmatpush2.msra.mxu0 0.0
    %986 = vmatprep.subr.mxu0 0.0
    %987 = vmatpush2.msra.mxu0 0.0
    %988 = vmatprep.mubr.f32.mxu0 0.0
    %989 = vmatmul.mubr.f32.gmra.mxu0 %v922
    %v990 = vpop.f32.mrf.mxu0
    %v991 = vadd.f32 0.0, %v990
    %v992 = vpop.f32.mrf.mxu0
    %993 = vdwg.mxu0
    %v994 = vadd.f32 %v271, %v991
    %v995 = vxor.u32 %v994, 2147483648
    %v996 = vmul.f32 %v995, 1.442695
    %v997 = vpow.pop %v996
    %v998 = vadd.f32 %v997, 1.0
    %v999 = vrcp.pop %v998
    %v1000 = vmul.f32 1.0, %v999
    %v1001 = vadd.f32 %v991, %v372
    %1003 = vrot.lane.b32.xlu0 %v1001, 64
    %v1004 = vpop.permute.xlu0 %1003
    %v1006 = vmul.f32 %v1000, %v1004
    %1008 = vrot.lane.b32.xlu0 %v1006, 64
    %v1009 = vpop.permute.xlu0 %1008
    %v1011 = vadd.f32 %v271, %v1009
    %v1012 = vtanh.pop %v1011
    %v1013 = vsub.f32 1.0, %v1000
    %1015 = vrot.lane.b32.xlu0 %v1012, 96
    %v1016 = vpop.permute.xlu0 %1015
    %v1018 = vmul.f32 %v1013, %v1016
    %v1019 = vmul.f32 %v1000, %v916
    %v1020 = vadd.f32 %v1018, %v1019
    %1022 = vrot.lane.b32.xlu0 %v1020, 96
    %v1023 = vpop.permute.xlu0 %1022
    %1025 = vst.msk [vmem:[#allocation2 + $0x30] sm:$0xff] %vm290, %v1023
    %v1026 = vsel %vm290, %v1023, 0
    %1028 = vmatprep.subr.mxu0 0.0
    %1029 = vmatpush1.msra.mxu0 0.0
    %1030 = vmatprep.subr.mxu0 0.0
    %1031 = vmatpush1.msra.mxu0 0.0
    %1032 = vmatprep.subr.mxu0 0.0
    %1033 = vmatpush1.msra.mxu0 0.0
    %1034 = vmatprep.subr.mxu0 0.0
    %1035 = vmatpush1.msra.mxu0 0.0
    %1036 = vmatprep.subr.mxu0 0.0
    %1037 = vmatpush1.msra.mxu0 0.0
    %1038 = vmatprep.subr.mxu0 0.0
    %1039 = vmatpush1.msra.mxu0 0.0
    %1040 = vmatprep.subr.mxu0 0.0
    %1041 = vmatpush1.msra.mxu0 0.0
    %1042 = vmatprep.subr.mxu0 0.0
    %1043 = vmatpush1.msra.mxu0 0.0
    %1044 = vmatprep.subr.mxu0 0.0
    %1045 = vmatpush1.msra.mxu0 0.0
    %1046 = vmatprep.subr.mxu0 0.0
    %1047 = vmatpush1.msra.mxu0 0.0
    %1048 = vmatprep.subr.mxu0 0.0
    %1049 = vmatpush1.msra.mxu0 0.0
    %1050 = vmatprep.subr.mxu0 0.0
    %1051 = vmatpush1.msra.mxu0 0.0
    %1052 = vmatprep.subr.mxu0 0.0
    %1053 = vmatpush1.msra.mxu0 %v282
    %1054 = vmatprep.subr.mxu0 0.0
    %1055 = vmatpush1.msra.mxu0 %v281
    %1056 = vmatprep.subr.mxu0 0.0
    %1057 = vmatpush1.msra.mxu0 %v280
    %1058 = vmatprep.subr.mxu0 0.0
    %1059 = vmatpush1.msra.mxu0 %v279
    %1060 = vmatprep.subr.mxu0 0.0
    %1061 = vmatpush2.msra.mxu0 0.0
    %1062 = vmatprep.subr.mxu0 0.0
    %1063 = vmatpush2.msra.mxu0 0.0
    %1064 = vmatprep.subr.mxu0 0.0
    %1065 = vmatpush2.msra.mxu0 0.0
    %1066 = vmatprep.subr.mxu0 0.0
    %1067 = vmatpush2.msra.mxu0 0.0
    %1068 = vmatprep.subr.mxu0 0.0
    %1069 = vmatpush2.msra.mxu0 0.0
    %1070 = vmatprep.subr.mxu0 0.0
    %1071 = vmatpush2.msra.mxu0 0.0
    %1072 = vmatprep.subr.mxu0 0.0
    %1073 = vmatpush2.msra.mxu0 0.0
    %1074 = vmatprep.subr.mxu0 0.0
    %1075 = vmatpush2.msra.mxu0 0.0
    %1076 = vmatprep.subr.mxu0 0.0
    %1077 = vmatpush2.msra.mxu0 0.0
    %1078 = vmatprep.subr.mxu0 0.0
    %1079 = vmatpush2.msra.mxu0 0.0
    %1080 = vmatprep.subr.mxu0 0.0
    %1081 = vmatpush2.msra.mxu0 0.0
    %1082 = vmatprep.subr.mxu0 0.0
    %1083 = vmatpush2.msra.mxu0 0.0
    %1084 = vmatprep.subr.mxu0 0.0
    %1085 = vmatpush2.msra.mxu0 0.0
    %1086 = vmatprep.subr.mxu0 0.0
    %1087 = vmatpush2.msra.mxu0 0.0
    %1088 = vmatprep.subr.mxu0 0.0
    %1089 = vmatpush2.msra.mxu0 0.0
    %1090 = vmatprep.subr.mxu0 0.0
    %1091 = vmatpush2.msra.mxu0 0.0
    %1092 = vmatprep.mubr.f32.mxu0 0.0
    %1093 = vmatmul.mubr.f32.gmra.mxu0 %v1026
    %v1094 = vpop.f32.mrf.mxu0
    %v1095 = vadd.f32 0.0, %v1094
    %v1096 = vpop.f32.mrf.mxu0
    %1097 = vdwg.mxu0
    %v1098 = vadd.f32 %v276, %v1095
    %v1099 = vxor.u32 %v1098, 2147483648
    %v1100 = vmul.f32 %v1099, 1.442695
    %v1101 = vpow.pop %v1100
    %v1102 = vadd.f32 %v1101, 1.0
    %v1103 = vrcp.pop %v1102
    %v1104 = vmul.f32 1.0, %v1103
    %v1105 = vadd.f32 %v1095, %v372
    %1107 = vrot.lane.b32.xlu0 %v1105, 64
    %v1108 = vpop.permute.xlu0 %1107
    %v1110 = vmul.f32 %v1104, %v1108
    %1112 = vrot.lane.b32.xlu0 %v1110, 64
    %v1113 = vpop.permute.xlu0 %1112
    %v1115 = vadd.f32 %v276, %v1113
    %v1116 = vtanh.pop %v1115
    %v1117 = vsub.f32 1.0, %v1104
    %1119 = vrot.lane.b32.xlu0 %v1116, 96
    %v1120 = vpop.permute.xlu0 %1119
    %v1122 = vmul.f32 %v1117, %v1120
    %v1123 = vmul.f32 %v1104, %v1020
    %v1124 = vadd.f32 %v1122, %v1123
    %1126 = vrot.lane.b32.xlu0 %v1124, 96
    %v1127 = vpop.permute.xlu0 %1126
    %1129 = vst.msk [vmem:[#allocation2 + $0x38] sm:$0xff] %vm290, %v1127
    %1130 = vst.msk [vmem:[#allocation16] sm:$0xff] %vm290, %v1127
    %v1131 = vld [vmem:[#allocation2] sm:$0xff]
    %v1132 = vld [vmem:[#allocation2 + $0x8] sm:$0xff]
    %v1133 = vld [vmem:[#allocation2 + $0x10] sm:$0xff]
    %v1134 = vld [vmem:[#allocation2 + $0x18] sm:$0xff]
    %v1135 = vld [vmem:[#allocation2 + $0x20] sm:$0xff]
    %v1136 = vld [vmem:[#allocation2 + $0x28] sm:$0xff]
    %v1137 = vld [vmem:[#allocation2 + $0x30] sm:$0xff]
    %v1138 = vld [vmem:[#allocation2 + $0x38] sm:$0xff]
    %v1139 = vld [vmem:[%s6] sm:$0xff]
    %v1140 = vld [vmem:[%s6 + $0x8] sm:$0xff]
    %v1141 = vld [vmem:[%s6 + $0x10] sm:$0xff]
    %v1142 = vld [vmem:[%s6 + $0x18] sm:$0xff]
    %v1143 = vld [vmem:[#allocation12] sm:$0x1]
    %v1145 = vlaneseq
    %v1146 = vshrl.u32 %v1145, 7
    %v1147 = vsub.s32 0, %v1146
    %v1148 = vrot.slane %v1143, %v1147
    %v1151 = vsel %vm290, %v1131, 0
    %v1154 = vsel %vm290, %v1132, 0
    %v1157 = vsel %vm290, %v1133, 0
    %v1160 = vsel %vm290, %v1134, 0
    %v1163 = vsel %vm290, %v1135, 0
    %v1166 = vsel %vm290, %v1136, 0
    %v1169 = vsel %vm290, %v1137, 0
    %v1172 = vsel %vm290, %v1138, 0
    %1174 = vmatprep.subr.mxu0 0.0
    %1175 = vmatpush1.msra.mxu0 0.0
    %1176 = vmatprep.subr.mxu0 0.0
    %1177 = vmatpush1.msra.mxu0 0.0
    %1178 = vmatprep.subr.mxu0 0.0
    %1179 = vmatpush1.msra.mxu0 0.0
    %1180 = vmatprep.subr.mxu0 0.0
    %1181 = vmatpush1.msra.mxu0 0.0
    %1182 = vmatprep.subr.mxu0 0.0
    %1183 = vmatpush1.msra.mxu0 0.0
    %1184 = vmatprep.subr.mxu0 0.0
    %1185 = vmatpush1.msra.mxu0 0.0
    %1186 = vmatprep.subr.mxu0 0.0
    %1187 = vmatpush1.msra.mxu0 0.0
    %1188 = vmatprep.subr.mxu0 0.0
    %1189 = vmatpush1.msra.mxu0 0.0
    %1190 = vmatprep.subr.mxu0 0.0
    %1191 = vmatpush1.msra.mxu0 0.0
    %1192 = vmatprep.subr.mxu0 0.0
    %1193 = vmatpush1.msra.mxu0 0.0
    %1194 = vmatprep.subr.mxu0 0.0
    %1195 = vmatpush1.msra.mxu0 0.0
    %1196 = vmatprep.subr.mxu0 0.0
    %1197 = vmatpush1.msra.mxu0 0.0
    %1198 = vmatprep.subr.mxu0 0.0
    %1199 = vmatpush1.msra.mxu0 %v1142
    %1200 = vmatprep.subr.mxu0 0.0
    %1201 = vmatpush1.msra.mxu0 %v1141
    %1202 = vmatprep.subr.mxu0 0.0
    %1203 = vmatpush1.msra.mxu0 %v1140
    %1204 = vmatprep.subr.mxu0 0.0
    %1205 = vmatpush1.msra.mxu0 %v1139
    %1206 = vmatprep.subr.mxu0 0.0
    %1207 = vmatpush2.msra.mxu0 0.0
    %1208 = vmatprep.subr.mxu0 0.0
    %1209 = vmatpush2.msra.mxu0 0.0
    %1210 = vmatprep.subr.mxu0 0.0
    %1211 = vmatpush2.msra.mxu0 0.0
    %1212 = vmatprep.subr.mxu0 0.0
    %1213 = vmatpush2.msra.mxu0 0.0
    %1214 = vmatprep.subr.mxu0 0.0
    %1215 = vmatpush2.msra.mxu0 0.0
    %1216 = vmatprep.subr.mxu0 0.0
    %1217 = vmatpush2.msra.mxu0 0.0
    %1218 = vmatprep.subr.mxu0 0.0
    %1219 = vmatpush2.msra.mxu0 0.0
    %1220 = vmatprep.subr.mxu0 0.0
    %1221 = vmatpush2.msra.mxu0 0.0
    %1222 = vmatprep.subr.mxu0 0.0
    %1223 = vmatpush2.msra.mxu0 0.0
    %1224 = vmatprep.subr.mxu0 0.0
    %1225 = vmatpush2.msra.mxu0 0.0
    %1226 = vmatprep.subr.mxu0 0.0
    %1227 = vmatpush2.msra.mxu0 0.0
    %1228 = vmatprep.subr.mxu0 0.0
    %1229 = vmatpush2.msra.mxu0 0.0
    %1230 = vmatprep.subr.mxu0 0.0
    %1231 = vmatpush2.msra.mxu0 0.0
    %1232 = vmatprep.subr.mxu0 0.0
    %1233 = vmatpush2.msra.mxu0 0.0
    %1234 = vmatprep.subr.mxu0 0.0
    %1235 = vmatpush2.msra.mxu0 0.0
    %1236 = vmatprep.subr.mxu0 0.0
    %1237 = vmatpush2.msra.mxu0 0.0
    %1238 = vmatprep.mubr.f32.mxu0 0.0
    %1239 = vmatmul.mubr.f32.gmra.mxu0 %v1151
    %v1240 = vpop.f32.mrf.mxu0
    %v1241 = vadd.f32 %v1148, %v1240
    %v1242 = vpop.f32.mrf.mxu0
    %1243 = vmatprep.mubr.f32.mxu0 0.0
    %1244 = vmatmul.mubr.f32.gmra.mxu0 %v1154
    %v1245 = vpop.f32.mrf.mxu0
    %v1246 = vadd.f32 %v1148, %v1245
    %v1247 = vpop.f32.mrf.mxu0
    %1248 = vmatprep.mubr.f32.mxu0 0.0
    %1249 = vmatmul.mubr.f32.gmra.mxu0 %v1157
    %v1250 = vpop.f32.mrf.mxu0
    %v1251 = vadd.f32 %v1148, %v1250
    %v1252 = vpop.f32.mrf.mxu0
    %1253 = vmatprep.mubr.f32.mxu0 0.0
    %1254 = vmatmul.mubr.f32.gmra.mxu0 %v1160
    %v1255 = vpop.f32.mrf.mxu0
    %v1256 = vadd.f32 %v1148, %v1255
    %v1257 = vpop.f32.mrf.mxu0
    %1258 = vmatprep.mubr.f32.mxu0 0.0
    %1259 = vmatmul.mubr.f32.gmra.mxu0 %v1163
    %v1260 = vpop.f32.mrf.mxu0
    %v1261 = vadd.f32 %v1148, %v1260
    %v1262 = vpop.f32.mrf.mxu0
    %1263 = vmatprep.mubr.f32.mxu0 0.0
    %1264 = vmatmul.mubr.f32.gmra.mxu0 %v1166
    %v1265 = vpop.f32.mrf.mxu0
    %v1266 = vadd.f32 %v1148, %v1265
    %v1267 = vpop.f32.mrf.mxu0
    %1268 = vmatprep.mubr.f32.mxu0 0.0
    %1269 = vmatmul.mubr.f32.gmra.mxu0 %v1169
    %v1270 = vpop.f32.mrf.mxu0
    %v1271 = vadd.f32 %v1148, %v1270
    %v1272 = vpop.f32.mrf.mxu0
    %1273 = vmatprep.mubr.f32.mxu0 0.0
    %1274 = vmatmul.mubr.f32.gmra.mxu0 %v1172
    %v1275 = vpop.f32.mrf.mxu0
    %v1276 = vadd.f32 %v1148, %v1275
    %v1277 = vpop.f32.mrf.mxu0
    %1278 = vdwg.mxu0
    %v1279 = vld [vmem:[#allocation11] sm:$0xff]
    %v1280 = vld [vmem:[#allocation11 + $0x8] sm:$0xff]
    %v1281 = vld [vmem:[#allocation11 + $0x10] sm:$0xff]
    %v1282 = vld [vmem:[#allocation11 + $0x18] sm:$0xff]
    %v1283 = vld [vmem:[#allocation14] sm:$0x1]
    %v1285 = vlaneseq
    %v1286 = vshrl.u32 %v1285, 7
    %v1287 = vsub.s32 0, %v1286
    %v1288 = vrot.slane %v1283, %v1287
    %s1289 = scalar_lea.vmem [#allocation3], 8
    %v1290 = vld [vmem:[%s1289] sm:$0xff]
    %v1292 = vsel %vm290, %v1290, 0
    %1294 = vmatprep.subr.mxu0 0.0
    %1295 = vmatpush1.msra.mxu0 0.0
    %1296 = vmatprep.subr.mxu0 0.0
    %1297 = vmatpush1.msra.mxu0 0.0
    %1298 = vmatprep.subr.mxu0 0.0
    %1299 = vmatpush1.msra.mxu0 0.0
    %1300 = vmatprep.subr.mxu0 0.0
    %1301 = vmatpush1.msra.mxu0 0.0
    %1302 = vmatprep.subr.mxu0 0.0
    %1303 = vmatpush1.msra.mxu0 0.0
    %1304 = vmatprep.subr.mxu0 0.0
    %1305 = vmatpush1.msra.mxu0 0.0
    %1306 = vmatprep.subr.mxu0 0.0
    %1307 = vmatpush1.msra.mxu0 0.0
    %1308 = vmatprep.subr.mxu0 0.0
    %1309 = vmatpush1.msra.mxu0 0.0
    %1310 = vmatprep.subr.mxu0 0.0
    %1311 = vmatpush1.msra.mxu0 0.0
    %1312 = vmatprep.subr.mxu0 0.0
    %1313 = vmatpush1.msra.mxu0 0.0
    %1314 = vmatprep.subr.mxu0 0.0
    %1315 = vmatpush1.msra.mxu0 0.0
    %1316 = vmatprep.subr.mxu0 0.0
    %1317 = vmatpush1.msra.mxu0 0.0
    %1318 = vmatprep.subr.mxu0 0.0
    %1319 = vmatpush1.msra.mxu0 %v1282
    %1320 = vmatprep.subr.mxu0 0.0
    %1321 = vmatpush1.msra.mxu0 %v1281
    %1322 = vmatprep.subr.mxu0 0.0
    %1323 = vmatpush1.msra.mxu0 %v1280
    %1324 = vmatprep.subr.mxu0 0.0
    %1325 = vmatpush1.msra.mxu0 %v1279
    %1326 = vmatprep.subr.mxu0 0.0
    %1327 = vmatpush2.msra.mxu0 0.0
    %1328 = vmatprep.subr.mxu0 0.0
    %1329 = vmatpush2.msra.mxu0 0.0
    %1330 = vmatprep.subr.mxu0 0.0
    %1331 = vmatpush2.msra.mxu0 0.0
    %1332 = vmatprep.subr.mxu0 0.0
    %1333 = vmatpush2.msra.mxu0 0.0
    %1334 = vmatprep.subr.mxu0 0.0
    %1335 = vmatpush2.msra.mxu0 0.0
    %1336 = vmatprep.subr.mxu0 0.0
    %1337 = vmatpush2.msra.mxu0 0.0
    %1338 = vmatprep.subr.mxu0 0.0
    %1339 = vmatpush2.msra.mxu0 0.0
    %1340 = vmatprep.subr.mxu0 0.0
    %1341 = vmatpush2.msra.mxu0 0.0
    %1342 = vmatprep.subr.mxu0 0.0
    %1343 = vmatpush2.msra.mxu0 0.0
    %1344 = vmatprep.subr.mxu0 0.0
    %1345 = vmatpush2.msra.mxu0 0.0
    %1346 = vmatprep.subr.mxu0 0.0
    %1347 = vmatpush2.msra.mxu0 0.0
    %1348 = vmatprep.subr.mxu0 0.0
    %1349 = vmatpush2.msra.mxu0 0.0
    %1350 = vmatprep.subr.mxu0 0.0
    %1351 = vmatpush2.msra.mxu0 0.0
    %1352 = vmatprep.subr.mxu0 0.0
    %1353 = vmatpush2.msra.mxu0 0.0
    %1354 = vmatprep.subr.mxu0 0.0
    %1355 = vmatpush2.msra.mxu0 0.0
    %1356 = vmatprep.subr.mxu0 0.0
    %1357 = vmatpush2.msra.mxu0 0.0
    %1358 = vmatprep.mubr.f32.mxu0 0.0
    %1359 = vmatmul.mubr.f32.gmra.mxu0 %v1292
    %v1360 = vpop.f32.mrf.mxu0
    %v1361 = vadd.f32 0.0, %v1360
    %v1362 = vpop.f32.mrf.mxu0
    %1363 = vdwg.mxu0
    %v1364 = vadd.f32 %v1241, %v1361
    %v1365 = vxor.u32 %v1364, 2147483648
    %v1366 = vmul.f32 %v1365, 1.442695
    %v1367 = vpow.pop %v1366
    %v1368 = vadd.f32 %v1367, 1.0
    %v1369 = vrcp.pop %v1368
    %v1370 = vmul.f32 1.0, %v1369
    %1371 = vrot.lane.b32.xlu0 %v1288, 64
    %v1372 = vpop.permute.xlu0 %1371
    %v1374 = vadd.f32 %v1361, %v1372
    %1376 = vrot.lane.b32.xlu0 %v1374, 64
    %v1377 = vpop.permute.xlu0 %1376
    %v1379 = vmul.f32 %v1370, %v1377
    %1381 = vrot.lane.b32.xlu0 %v1379, 64
    %v1382 = vpop.permute.xlu0 %1381
    %v1384 = vadd.f32 %v1241, %v1382
    %v1385 = vtanh.pop %v1384
    %v1386 = vsub.f32 1.0, %v1370
    %1388 = vrot.lane.b32.xlu0 %v1385, 96
    %v1389 = vpop.permute.xlu0 %1388
    %v1391 = vmul.f32 %v1386, %v1389
    %1392 = vrot.lane.b32.xlu0 %v1290, 32
    %v1393 = vpop.permute.xlu0 %1392
    %v1395 = vmul.f32 %v1370, %v1393
    %v1396 = vadd.f32 %v1391, %v1395
    %1398 = vrot.lane.b32.xlu0 %v1396, 96
    %v1399 = vpop.permute.xlu0 %1398
    %v1400 = vsel %vm290, %v1399, 0
    %1402 = vmatprep.subr.mxu0 0.0
    %1403 = vmatpush1.msra.mxu0 0.0
    %1404 = vmatprep.subr.mxu0 0.0
    %1405 = vmatpush1.msra.mxu0 0.0
    %1406 = vmatprep.subr.mxu0 0.0
    %1407 = vmatpush1.msra.mxu0 0.0
    %1408 = vmatprep.subr.mxu0 0.0
    %1409 = vmatpush1.msra.mxu0 0.0
    %1410 = vmatprep.subr.mxu0 0.0
    %1411 = vmatpush1.msra.mxu0 0.0
    %1412 = vmatprep.subr.mxu0 0.0
    %1413 = vmatpush1.msra.mxu0 0.0
    %1414 = vmatprep.subr.mxu0 0.0
    %1415 = vmatpush1.msra.mxu0 0.0
    %1416 = vmatprep.subr.mxu0 0.0
    %1417 = vmatpush1.msra.mxu0 0.0
    %1418 = vmatprep.subr.mxu0 0.0
    %1419 = vmatpush1.msra.mxu0 0.0
    %1420 = vmatprep.subr.mxu0 0.0
    %1421 = vmatpush1.msra.mxu0 0.0
    %1422 = vmatprep.subr.mxu0 0.0
    %1423 = vmatpush1.msra.mxu0 0.0
    %1424 = vmatprep.subr.mxu0 0.0
    %1425 = vmatpush1.msra.mxu0 0.0
    %1426 = vmatprep.subr.mxu0 0.0
    %1427 = vmatpush1.msra.mxu0 %v1282
    %1428 = vmatprep.subr.mxu0 0.0
    %1429 = vmatpush1.msra.mxu0 %v1281
    %1430 = vmatprep.subr.mxu0 0.0
    %1431 = vmatpush1.msra.mxu0 %v1280
    %1432 = vmatprep.subr.mxu0 0.0
    %1433 = vmatpush1.msra.mxu0 %v1279
    %1434 = vmatprep.subr.mxu0 0.0
    %1435 = vmatpush2.msra.mxu0 0.0
    %1436 = vmatprep.subr.mxu0 0.0
    %1437 = vmatpush2.msra.mxu0 0.0
    %1438 = vmatprep.subr.mxu0 0.0
    %1439 = vmatpush2.msra.mxu0 0.0
    %1440 = vmatprep.subr.mxu0 0.0
    %1441 = vmatpush2.msra.mxu0 0.0
    %1442 = vmatprep.subr.mxu0 0.0
    %1443 = vmatpush2.msra.mxu0 0.0
    %1444 = vmatprep.subr.mxu0 0.0
    %1445 = vmatpush2.msra.mxu0 0.0
    %1446 = vmatprep.subr.mxu0 0.0
    %1447 = vmatpush2.msra.mxu0 0.0
    %1448 = vmatprep.subr.mxu0 0.0
    %1449 = vmatpush2.msra.mxu0 0.0
    %1450 = vmatprep.subr.mxu0 0.0
    %1451 = vmatpush2.msra.mxu0 0.0
    %1452 = vmatprep.subr.mxu0 0.0
    %1453 = vmatpush2.msra.mxu0 0.0
    %1454 = vmatprep.subr.mxu0 0.0
    %1455 = vmatpush2.msra.mxu0 0.0
    %1456 = vmatprep.subr.mxu0 0.0
    %1457 = vmatpush2.msra.mxu0 0.0
    %1458 = vmatprep.subr.mxu0 0.0
    %1459 = vmatpush2.msra.mxu0 0.0
    %1460 = vmatprep.subr.mxu0 0.0
    %1461 = vmatpush2.msra.mxu0 0.0
    %1462 = vmatprep.subr.mxu0 0.0
    %1463 = vmatpush2.msra.mxu0 0.0
    %1464 = vmatprep.subr.mxu0 0.0
    %1465 = vmatpush2.msra.mxu0 0.0
    %1466 = vmatprep.mubr.f32.mxu0 0.0
    %1467 = vmatmul.mubr.f32.gmra.mxu0 %v1400
    %v1468 = vpop.f32.mrf.mxu0
    %v1469 = vadd.f32 0.0, %v1468
    %v1470 = vpop.f32.mrf.mxu0
    %1471 = vdwg.mxu0
    %v1472 = vadd.f32 %v1246, %v1469
    %v1473 = vxor.u32 %v1472, 2147483648
    %v1474 = vmul.f32 %v1473, 1.442695
    %v1475 = vpow.pop %v1474
    %v1476 = vadd.f32 %v1475, 1.0
    %v1477 = vrcp.pop %v1476
    %v1478 = vmul.f32 1.0, %v1477
    %v1479 = vadd.f32 %v1469, %v1372
    %1481 = vrot.lane.b32.xlu0 %v1479, 64
    %v1482 = vpop.permute.xlu0 %1481
    %v1484 = vmul.f32 %v1478, %v1482
    %1486 = vrot.lane.b32.xlu0 %v1484, 64
    %v1487 = vpop.permute.xlu0 %1486
    %v1489 = vadd.f32 %v1246, %v1487
    %v1490 = vtanh.pop %v1489
    %v1491 = vsub.f32 1.0, %v1478
    %1493 = vrot.lane.b32.xlu0 %v1490, 96
    %v1494 = vpop.permute.xlu0 %1493
    %v1496 = vmul.f32 %v1491, %v1494
    %v1497 = vmul.f32 %v1478, %v1396
    %v1498 = vadd.f32 %v1496, %v1497
    %1500 = vrot.lane.b32.xlu0 %v1498, 96
    %v1501 = vpop.permute.xlu0 %1500
    %v1502 = vsel %vm290, %v1501, 0
    %1504 = vmatprep.subr.mxu0 0.0
    %1505 = vmatpush1.msra.mxu0 0.0
    %1506 = vmatprep.subr.mxu0 0.0
    %1507 = vmatpush1.msra.mxu0 0.0
    %1508 = vmatprep.subr.mxu0 0.0
    %1509 = vmatpush1.msra.mxu0 0.0
    %1510 = vmatprep.subr.mxu0 0.0
    %1511 = vmatpush1.msra.mxu0 0.0
    %1512 = vmatprep.subr.mxu0 0.0
    %1513 = vmatpush1.msra.mxu0 0.0
    %1514 = vmatprep.subr.mxu0 0.0
    %1515 = vmatpush1.msra.mxu0 0.0
    %1516 = vmatprep.subr.mxu0 0.0
    %1517 = vmatpush1.msra.mxu0 0.0
    %1518 = vmatprep.subr.mxu0 0.0
    %1519 = vmatpush1.msra.mxu0 0.0
    %1520 = vmatprep.subr.mxu0 0.0
    %1521 = vmatpush1.msra.mxu0 0.0
    %1522 = vmatprep.subr.mxu0 0.0
    %1523 = vmatpush1.msra.mxu0 0.0
    %1524 = vmatprep.subr.mxu0 0.0
    %1525 = vmatpush1.msra.mxu0 0.0
    %1526 = vmatprep.subr.mxu0 0.0
    %1527 = vmatpush1.msra.mxu0 0.0
    %1528 = vmatprep.subr.mxu0 0.0
    %1529 = vmatpush1.msra.mxu0 %v1282
    %1530 = vmatprep.subr.mxu0 0.0
    %1531 = vmatpush1.msra.mxu0 %v1281
    %1532 = vmatprep.subr.mxu0 0.0
    %1533 = vmatpush1.msra.mxu0 %v1280
    %1534 = vmatprep.subr.mxu0 0.0
    %1535 = vmatpush1.msra.mxu0 %v1279
    %1536 = vmatprep.subr.mxu0 0.0
    %1537 = vmatpush2.msra.mxu0 0.0
    %1538 = vmatprep.subr.mxu0 0.0
    %1539 = vmatpush2.msra.mxu0 0.0
    %1540 = vmatprep.subr.mxu0 0.0
    %1541 = vmatpush2.msra.mxu0 0.0
    %1542 = vmatprep.subr.mxu0 0.0
    %1543 = vmatpush2.msra.mxu0 0.0
    %1544 = vmatprep.subr.mxu0 0.0
    %1545 = vmatpush2.msra.mxu0 0.0
    %1546 = vmatprep.subr.mxu0 0.0
    %1547 = vmatpush2.msra.mxu0 0.0
    %1548 = vmatprep.subr.mxu0 0.0
    %1549 = vmatpush2.msra.mxu0 0.0
    %1550 = vmatprep.subr.mxu0 0.0
    %1551 = vmatpush2.msra.mxu0 0.0
    %1552 = vmatprep.subr.mxu0 0.0
    %1553 = vmatpush2.msra.mxu0 0.0
    %1554 = vmatprep.subr.mxu0 0.0
    %1555 = vmatpush2.msra.mxu0 0.0
    %1556 = vmatprep.subr.mxu0 0.0
    %1557 = vmatpush2.msra.mxu0 0.0
    %1558 = vmatprep.subr.mxu0 0.0
    %1559 = vmatpush2.msra.mxu0 0.0
    %1560 = vmatprep.subr.mxu0 0.0
    %1561 = vmatpush2.msra.mxu0 0.0
    %1562 = vmatprep.subr.mxu0 0.0
    %1563 = vmatpush2.msra.mxu0 0.0
    %1564 = vmatprep.subr.mxu0 0.0
    %1565 = vmatpush2.msra.mxu0 0.0
    %1566 = vmatprep.subr.mxu0 0.0
    %1567 = vmatpush2.msra.mxu0 0.0
    %1568 = vmatprep.mubr.f32.mxu0 0.0
    %1569 = vmatmul.mubr.f32.gmra.mxu0 %v1502
    %v1570 = vpop.f32.mrf.mxu0
    %v1571 = vadd.f32 0.0, %v1570
    %v1572 = vpop.f32.mrf.mxu0
    %1573 = vdwg.mxu0
    %v1574 = vadd.f32 %v1251, %v1571
    %v1575 = vxor.u32 %v1574, 2147483648
    %v1576 = vmul.f32 %v1575, 1.442695
    %v1577 = vpow.pop %v1576
    %v1578 = vadd.f32 %v1577, 1.0
    %v1579 = vrcp.pop %v1578
    %v1580 = vmul.f32 1.0, %v1579
    %v1581 = vadd.f32 %v1571, %v1372
    %1583 = vrot.lane.b32.xlu0 %v1581, 64
    %v1584 = vpop.permute.xlu0 %1583
    %v1586 = vmul.f32 %v1580, %v1584
    %1588 = vrot.lane.b32.xlu0 %v1586, 64
    %v1589 = vpop.permute.xlu0 %1588
    %v1591 = vadd.f32 %v1251, %v1589
    %v1592 = vtanh.pop %v1591
    %v1593 = vsub.f32 1.0, %v1580
    %1595 = vrot.lane.b32.xlu0 %v1592, 96
    %v1596 = vpop.permute.xlu0 %1595
    %v1598 = vmul.f32 %v1593, %v1596
    %v1599 = vmul.f32 %v1580, %v1498
    %v1600 = vadd.f32 %v1598, %v1599
    %1602 = vrot.lane.b32.xlu0 %v1600, 96
    %v1603 = vpop.permute.xlu0 %1602
    %v1604 = vsel %vm290, %v1603, 0
    %1606 = vmatprep.subr.mxu0 0.0
    %1607 = vmatpush1.msra.mxu0 0.0
    %1608 = vmatprep.subr.mxu0 0.0
    %1609 = vmatpush1.msra.mxu0 0.0
    %1610 = vmatprep.subr.mxu0 0.0
    %1611 = vmatpush1.msra.mxu0 0.0
    %1612 = vmatprep.subr.mxu0 0.0
    %1613 = vmatpush1.msra.mxu0 0.0
    %1614 = vmatprep.subr.mxu0 0.0
    %1615 = vmatpush1.msra.mxu0 0.0
    %1616 = vmatprep.subr.mxu0 0.0
    %1617 = vmatpush1.msra.mxu0 0.0
    %1618 = vmatprep.subr.mxu0 0.0
    %1619 = vmatpush1.msra.mxu0 0.0
    %1620 = vmatprep.subr.mxu0 0.0
    %1621 = vmatpush1.msra.mxu0 0.0
    %1622 = vmatprep.subr.mxu0 0.0
    %1623 = vmatpush1.msra.mxu0 0.0
    %1624 = vmatprep.subr.mxu0 0.0
    %1625 = vmatpush1.msra.mxu0 0.0
    %1626 = vmatprep.subr.mxu0 0.0
    %1627 = vmatpush1.msra.mxu0 0.0
    %1628 = vmatprep.subr.mxu0 0.0
    %1629 = vmatpush1.msra.mxu0 0.0
    %1630 = vmatprep.subr.mxu0 0.0
    %1631 = vmatpush1.msra.mxu0 %v1282
    %1632 = vmatprep.subr.mxu0 0.0
    %1633 = vmatpush1.msra.mxu0 %v1281
    %1634 = vmatprep.subr.mxu0 0.0
    %1635 = vmatpush1.msra.mxu0 %v1280
    %1636 = vmatprep.subr.mxu0 0.0
    %1637 = vmatpush1.msra.mxu0 %v1279
    %1638 = vmatprep.subr.mxu0 0.0
    %1639 = vmatpush2.msra.mxu0 0.0
    %1640 = vmatprep.subr.mxu0 0.0
    %1641 = vmatpush2.msra.mxu0 0.0
    %1642 = vmatprep.subr.mxu0 0.0
    %1643 = vmatpush2.msra.mxu0 0.0
    %1644 = vmatprep.subr.mxu0 0.0
    %1645 = vmatpush2.msra.mxu0 0.0
    %1646 = vmatprep.subr.mxu0 0.0
    %1647 = vmatpush2.msra.mxu0 0.0
    %1648 = vmatprep.subr.mxu0 0.0
    %1649 = vmatpush2.msra.mxu0 0.0
    %1650 = vmatprep.subr.mxu0 0.0
    %1651 = vmatpush2.msra.mxu0 0.0
    %1652 = vmatprep.subr.mxu0 0.0
    %1653 = vmatpush2.msra.mxu0 0.0
    %1654 = vmatprep.subr.mxu0 0.0
    %1655 = vmatpush2.msra.mxu0 0.0
    %1656 = vmatprep.subr.mxu0 0.0
    %1657 = vmatpush2.msra.mxu0 0.0
    %1658 = vmatprep.subr.mxu0 0.0
    %1659 = vmatpush2.msra.mxu0 0.0
    %1660 = vmatprep.subr.mxu0 0.0
    %1661 = vmatpush2.msra.mxu0 0.0
    %1662 = vmatprep.subr.mxu0 0.0
    %1663 = vmatpush2.msra.mxu0 0.0
    %1664 = vmatprep.subr.mxu0 0.0
    %1665 = vmatpush2.msra.mxu0 0.0
    %1666 = vmatprep.subr.mxu0 0.0
    %1667 = vmatpush2.msra.mxu0 0.0
    %1668 = vmatprep.subr.mxu0 0.0
    %1669 = vmatpush2.msra.mxu0 0.0
    %1670 = vmatprep.mubr.f32.mxu0 0.0
    %1671 = vmatmul.mubr.f32.gmra.mxu0 %v1604
    %v1672 = vpop.f32.mrf.mxu0
    %v1673 = vadd.f32 0.0, %v1672
    %v1674 = vpop.f32.mrf.mxu0
    %1675 = vdwg.mxu0
    %v1676 = vadd.f32 %v1256, %v1673
    %v1677 = vxor.u32 %v1676, 2147483648
    %v1678 = vmul.f32 %v1677, 1.442695
    %v1679 = vpow.pop %v1678
    %v1680 = vadd.f32 %v1679, 1.0
    %v1681 = vrcp.pop %v1680
    %v1682 = vmul.f32 1.0, %v1681
    %v1683 = vadd.f32 %v1673, %v1372
    %1685 = vrot.lane.b32.xlu0 %v1683, 64
    %v1686 = vpop.permute.xlu0 %1685
    %v1688 = vmul.f32 %v1682, %v1686
    %1690 = vrot.lane.b32.xlu0 %v1688, 64
    %v1691 = vpop.permute.xlu0 %1690
    %v1693 = vadd.f32 %v1256, %v1691
    %v1694 = vtanh.pop %v1693
    %v1695 = vsub.f32 1.0, %v1682
    %1697 = vrot.lane.b32.xlu0 %v1694, 96
    %v1698 = vpop.permute.xlu0 %1697
    %v1700 = vmul.f32 %v1695, %v1698
    %v1701 = vmul.f32 %v1682, %v1600
    %v1702 = vadd.f32 %v1700, %v1701
    %1704 = vrot.lane.b32.xlu0 %v1702, 96
    %v1705 = vpop.permute.xlu0 %1704
    %v1706 = vsel %vm290, %v1705, 0
    %1708 = vmatprep.subr.mxu0 0.0
    %1709 = vmatpush1.msra.mxu0 0.0
    %1710 = vmatprep.subr.mxu0 0.0
    %1711 = vmatpush1.msra.mxu0 0.0
    %1712 = vmatprep.subr.mxu0 0.0
    %1713 = vmatpush1.msra.mxu0 0.0
    %1714 = vmatprep.subr.mxu0 0.0
    %1715 = vmatpush1.msra.mxu0 0.0
    %1716 = vmatprep.subr.mxu0 0.0
    %1717 = vmatpush1.msra.mxu0 0.0
    %1718 = vmatprep.subr.mxu0 0.0
    %1719 = vmatpush1.msra.mxu0 0.0
    %1720 = vmatprep.subr.mxu0 0.0
    %1721 = vmatpush1.msra.mxu0 0.0
    %1722 = vmatprep.subr.mxu0 0.0
    %1723 = vmatpush1.msra.mxu0 0.0
    %1724 = vmatprep.subr.mxu0 0.0
    %1725 = vmatpush1.msra.mxu0 0.0
    %1726 = vmatprep.subr.mxu0 0.0
    %1727 = vmatpush1.msra.mxu0 0.0
    %1728 = vmatprep.subr.mxu0 0.0
    %1729 = vmatpush1.msra.mxu0 0.0
    %1730 = vmatprep.subr.mxu0 0.0
    %1731 = vmatpush1.msra.mxu0 0.0
    %1732 = vmatprep.subr.mxu0 0.0
    %1733 = vmatpush1.msra.mxu0 %v1282
    %1734 = vmatprep.subr.mxu0 0.0
    %1735 = vmatpush1.msra.mxu0 %v1281
    %1736 = vmatprep.subr.mxu0 0.0
    %1737 = vmatpush1.msra.mxu0 %v1280
    %1738 = vmatprep.subr.mxu0 0.0
    %1739 = vmatpush1.msra.mxu0 %v1279
    %1740 = vmatprep.subr.mxu0 0.0
    %1741 = vmatpush2.msra.mxu0 0.0
    %1742 = vmatprep.subr.mxu0 0.0
    %1743 = vmatpush2.msra.mxu0 0.0
    %1744 = vmatprep.subr.mxu0 0.0
    %1745 = vmatpush2.msra.mxu0 0.0
    %1746 = vmatprep.subr.mxu0 0.0
    %1747 = vmatpush2.msra.mxu0 0.0
    %1748 = vmatprep.subr.mxu0 0.0
    %1749 = vmatpush2.msra.mxu0 0.0
    %1750 = vmatprep.subr.mxu0 0.0
    %1751 = vmatpush2.msra.mxu0 0.0
    %1752 = vmatprep.subr.mxu0 0.0
    %1753 = vmatpush2.msra.mxu0 0.0
    %1754 = vmatprep.subr.mxu0 0.0
    %1755 = vmatpush2.msra.mxu0 0.0
    %1756 = vmatprep.subr.mxu0 0.0
    %1757 = vmatpush2.msra.mxu0 0.0
    %1758 = vmatprep.subr.mxu0 0.0
    %1759 = vmatpush2.msra.mxu0 0.0
    %1760 = vmatprep.subr.mxu0 0.0
    %1761 = vmatpush2.msra.mxu0 0.0
    %1762 = vmatprep.subr.mxu0 0.0
    %1763 = vmatpush2.msra.mxu0 0.0
    %1764 = vmatprep.subr.mxu0 0.0
    %1765 = vmatpush2.msra.mxu0 0.0
    %1766 = vmatprep.subr.mxu0 0.0
    %1767 = vmatpush2.msra.mxu0 0.0
    %1768 = vmatprep.subr.mxu0 0.0
    %1769 = vmatpush2.msra.mxu0 0.0
    %1770 = vmatprep.subr.mxu0 0.0
    %1771 = vmatpush2.msra.mxu0 0.0
    %1772 = vmatprep.mubr.f32.mxu0 0.0
    %1773 = vmatmul.mubr.f32.gmra.mxu0 %v1706
    %v1774 = vpop.f32.mrf.mxu0
    %v1775 = vadd.f32 0.0, %v1774
    %v1776 = vpop.f32.mrf.mxu0
    %1777 = vdwg.mxu0
    %v1778 = vadd.f32 %v1261, %v1775
    %v1779 = vxor.u32 %v1778, 2147483648
    %v1780 = vmul.f32 %v1779, 1.442695
    %v1781 = vpow.pop %v1780
    %v1782 = vadd.f32 %v1781, 1.0
    %v1783 = vrcp.pop %v1782
    %v1784 = vmul.f32 1.0, %v1783
    %v1785 = vadd.f32 %v1775, %v1372
    %1787 = vrot.lane.b32.xlu0 %v1785, 64
    %v1788 = vpop.permute.xlu0 %1787
    %v1790 = vmul.f32 %v1784, %v1788
    %1792 = vrot.lane.b32.xlu0 %v1790, 64
    %v1793 = vpop.permute.xlu0 %1792
    %v1795 = vadd.f32 %v1261, %v1793
    %v1796 = vtanh.pop %v1795
    %v1797 = vsub.f32 1.0, %v1784
    %1799 = vrot.lane.b32.xlu0 %v1796, 96
    %v1800 = vpop.permute.xlu0 %1799
    %v1802 = vmul.f32 %v1797, %v1800
    %v1803 = vmul.f32 %v1784, %v1702
    %v1804 = vadd.f32 %v1802, %v1803
    %1806 = vrot.lane.b32.xlu0 %v1804, 96
    %v1807 = vpop.permute.xlu0 %1806
    %v1808 = vsel %vm290, %v1807, 0
    %1810 = vmatprep.subr.mxu0 0.0
    %1811 = vmatpush1.msra.mxu0 0.0
    %1812 = vmatprep.subr.mxu0 0.0
    %1813 = vmatpush1.msra.mxu0 0.0
    %1814 = vmatprep.subr.mxu0 0.0
    %1815 = vmatpush1.msra.mxu0 0.0
    %1816 = vmatprep.subr.mxu0 0.0
    %1817 = vmatpush1.msra.mxu0 0.0
    %1818 = vmatprep.subr.mxu0 0.0
    %1819 = vmatpush1.msra.mxu0 0.0
    %1820 = vmatprep.subr.mxu0 0.0
    %1821 = vmatpush1.msra.mxu0 0.0
    %1822 = vmatprep.subr.mxu0 0.0
    %1823 = vmatpush1.msra.mxu0 0.0
    %1824 = vmatprep.subr.mxu0 0.0
    %1825 = vmatpush1.msra.mxu0 0.0
    %1826 = vmatprep.subr.mxu0 0.0
    %1827 = vmatpush1.msra.mxu0 0.0
    %1828 = vmatprep.subr.mxu0 0.0
    %1829 = vmatpush1.msra.mxu0 0.0
    %1830 = vmatprep.subr.mxu0 0.0
    %1831 = vmatpush1.msra.mxu0 0.0
    %1832 = vmatprep.subr.mxu0 0.0
    %1833 = vmatpush1.msra.mxu0 0.0
    %1834 = vmatprep.subr.mxu0 0.0
    %1835 = vmatpush1.msra.mxu0 %v1282
    %1836 = vmatprep.subr.mxu0 0.0
    %1837 = vmatpush1.msra.mxu0 %v1281
    %1838 = vmatprep.subr.mxu0 0.0
    %1839 = vmatpush1.msra.mxu0 %v1280
    %1840 = vmatprep.subr.mxu0 0.0
    %1841 = vmatpush1.msra.mxu0 %v1279
    %1842 = vmatprep.subr.mxu0 0.0
    %1843 = vmatpush2.msra.mxu0 0.0
    %1844 = vmatprep.subr.mxu0 0.0
    %1845 = vmatpush2.msra.mxu0 0.0
    %1846 = vmatprep.subr.mxu0 0.0
    %1847 = vmatpush2.msra.mxu0 0.0
    %1848 = vmatprep.subr.mxu0 0.0
    %1849 = vmatpush2.msra.mxu0 0.0
    %1850 = vmatprep.subr.mxu0 0.0
    %1851 = vmatpush2.msra.mxu0 0.0
    %1852 = vmatprep.subr.mxu0 0.0
    %1853 = vmatpush2.msra.mxu0 0.0
    %1854 = vmatprep.subr.mxu0 0.0
    %1855 = vmatpush2.msra.mxu0 0.0
    %1856 = vmatprep.subr.mxu0 0.0
    %1857 = vmatpush2.msra.mxu0 0.0
    %1858 = vmatprep.subr.mxu0 0.0
    %1859 = vmatpush2.msra.mxu0 0.0
    %1860 = vmatprep.subr.mxu0 0.0
    %1861 = vmatpush2.msra.mxu0 0.0
    %1862 = vmatprep.subr.mxu0 0.0
    %1863 = vmatpush2.msra.mxu0 0.0
    %1864 = vmatprep.subr.mxu0 0.0
    %1865 = vmatpush2.msra.mxu0 0.0
    %1866 = vmatprep.subr.mxu0 0.0
    %1867 = vmatpush2.msra.mxu0 0.0
    %1868 = vmatprep.subr.mxu0 0.0
    %1869 = vmatpush2.msra.mxu0 0.0
    %1870 = vmatprep.subr.mxu0 0.0
    %1871 = vmatpush2.msra.mxu0 0.0
    %1872 = vmatprep.subr.mxu0 0.0
    %1873 = vmatpush2.msra.mxu0 0.0
    %1874 = vmatprep.mubr.f32.mxu0 0.0
    %1875 = vmatmul.mubr.f32.gmra.mxu0 %v1808
    %v1876 = vpop.f32.mrf.mxu0
    %v1877 = vadd.f32 0.0, %v1876
    %v1878 = vpop.f32.mrf.mxu0
    %1879 = vdwg.mxu0
    %v1880 = vadd.f32 %v1266, %v1877
    %v1881 = vxor.u32 %v1880, 2147483648
    %v1882 = vmul.f32 %v1881, 1.442695
    %v1883 = vpow.pop %v1882
    %v1884 = vadd.f32 %v1883, 1.0
    %v1885 = vrcp.pop %v1884
    %v1886 = vmul.f32 1.0, %v1885
    %v1887 = vadd.f32 %v1877, %v1372
    %1889 = vrot.lane.b32.xlu0 %v1887, 64
    %v1890 = vpop.permute.xlu0 %1889
    %v1892 = vmul.f32 %v1886, %v1890
    %1894 = vrot.lane.b32.xlu0 %v1892, 64
    %v1895 = vpop.permute.xlu0 %1894
    %v1897 = vadd.f32 %v1266, %v1895
    %v1898 = vtanh.pop %v1897
    %v1899 = vsub.f32 1.0, %v1886
    %1901 = vrot.lane.b32.xlu0 %v1898, 96
    %v1902 = vpop.permute.xlu0 %1901
    %v1904 = vmul.f32 %v1899, %v1902
    %v1905 = vmul.f32 %v1886, %v1804
    %v1906 = vadd.f32 %v1904, %v1905
    %1908 = vrot.lane.b32.xlu0 %v1906, 96
    %v1909 = vpop.permute.xlu0 %1908
    %v1910 = vsel %vm290, %v1909, 0
    %1912 = vmatprep.subr.mxu0 0.0
    %1913 = vmatpush1.msra.mxu0 0.0
    %1914 = vmatprep.subr.mxu0 0.0
    %1915 = vmatpush1.msra.mxu0 0.0
    %1916 = vmatprep.subr.mxu0 0.0
    %1917 = vmatpush1.msra.mxu0 0.0
    %1918 = vmatprep.subr.mxu0 0.0
    %1919 = vmatpush1.msra.mxu0 0.0
    %1920 = vmatprep.subr.mxu0 0.0
    %1921 = vmatpush1.msra.mxu0 0.0
    %1922 = vmatprep.subr.mxu0 0.0
    %1923 = vmatpush1.msra.mxu0 0.0
    %1924 = vmatprep.subr.mxu0 0.0
    %1925 = vmatpush1.msra.mxu0 0.0
    %1926 = vmatprep.subr.mxu0 0.0
    %1927 = vmatpush1.msra.mxu0 0.0
    %1928 = vmatprep.subr.mxu0 0.0
    %1929 = vmatpush1.msra.mxu0 0.0
    %1930 = vmatprep.subr.mxu0 0.0
    %1931 = vmatpush1.msra.mxu0 0.0
    %1932 = vmatprep.subr.mxu0 0.0
    %1933 = vmatpush1.msra.mxu0 0.0
    %1934 = vmatprep.subr.mxu0 0.0
    %1935 = vmatpush1.msra.mxu0 0.0
    %1936 = vmatprep.subr.mxu0 0.0
    %1937 = vmatpush1.msra.mxu0 %v1282
    %1938 = vmatprep.subr.mxu0 0.0
    %1939 = vmatpush1.msra.mxu0 %v1281
    %1940 = vmatprep.subr.mxu0 0.0
    %1941 = vmatpush1.msra.mxu0 %v1280
    %1942 = vmatprep.subr.mxu0 0.0
    %1943 = vmatpush1.msra.mxu0 %v1279
    %1944 = vmatprep.subr.mxu0 0.0
    %1945 = vmatpush2.msra.mxu0 0.0
    %1946 = vmatprep.subr.mxu0 0.0
    %1947 = vmatpush2.msra.mxu0 0.0
    %1948 = vmatprep.subr.mxu0 0.0
    %1949 = vmatpush2.msra.mxu0 0.0
    %1950 = vmatprep.subr.mxu0 0.0
    %1951 = vmatpush2.msra.mxu0 0.0
    %1952 = vmatprep.subr.mxu0 0.0
    %1953 = vmatpush2.msra.mxu0 0.0
    %1954 = vmatprep.subr.mxu0 0.0
    %1955 = vmatpush2.msra.mxu0 0.0
    %1956 = vmatprep.subr.mxu0 0.0
    %1957 = vmatpush2.msra.mxu0 0.0
    %1958 = vmatprep.subr.mxu0 0.0
    %1959 = vmatpush2.msra.mxu0 0.0
    %1960 = vmatprep.subr.mxu0 0.0
    %1961 = vmatpush2.msra.mxu0 0.0
    %1962 = vmatprep.subr.mxu0 0.0
    %1963 = vmatpush2.msra.mxu0 0.0
    %1964 = vmatprep.subr.mxu0 0.0
    %1965 = vmatpush2.msra.mxu0 0.0
    %1966 = vmatprep.subr.mxu0 0.0
    %1967 = vmatpush2.msra.mxu0 0.0
    %1968 = vmatprep.subr.mxu0 0.0
    %1969 = vmatpush2.msra.mxu0 0.0
    %1970 = vmatprep.subr.mxu0 0.0
    %1971 = vmatpush2.msra.mxu0 0.0
    %1972 = vmatprep.subr.mxu0 0.0
    %1973 = vmatpush2.msra.mxu0 0.0
    %1974 = vmatprep.subr.mxu0 0.0
    %1975 = vmatpush2.msra.mxu0 0.0
    %1976 = vmatprep.mubr.f32.mxu0 0.0
    %1977 = vmatmul.mubr.f32.gmra.mxu0 %v1910
    %v1978 = vpop.f32.mrf.mxu0
    %v1979 = vadd.f32 0.0, %v1978
    %v1980 = vpop.f32.mrf.mxu0
    %1981 = vdwg.mxu0
    %v1982 = vadd.f32 %v1271, %v1979
    %v1983 = vxor.u32 %v1982, 2147483648
    %v1984 = vmul.f32 %v1983, 1.442695
    %v1985 = vpow.pop %v1984
    %v1986 = vadd.f32 %v1985, 1.0
    %v1987 = vrcp.pop %v1986
    %v1988 = vmul.f32 1.0, %v1987
    %v1989 = vadd.f32 %v1979, %v1372
    %1991 = vrot.lane.b32.xlu0 %v1989, 64
    %v1992 = vpop.permute.xlu0 %1991
    %v1994 = vmul.f32 %v1988, %v1992
    %1996 = vrot.lane.b32.xlu0 %v1994, 64
    %v1997 = vpop.permute.xlu0 %1996
    %v1999 = vadd.f32 %v1271, %v1997
    %v2000 = vtanh.pop %v1999
    %v2001 = vsub.f32 1.0, %v1988
    %2003 = vrot.lane.b32.xlu0 %v2000, 96
    %v2004 = vpop.permute.xlu0 %2003
    %v2006 = vmul.f32 %v2001, %v2004
    %v2007 = vmul.f32 %v1988, %v1906
    %v2008 = vadd.f32 %v2006, %v2007
    %2010 = vrot.lane.b32.xlu0 %v2008, 96
    %v2011 = vpop.permute.xlu0 %2010
    %v2012 = vsel %vm290, %v2011, 0
    %2014 = vmatprep.subr.mxu0 0.0
    %2015 = vmatpush1.msra.mxu0 0.0
    %2016 = vmatprep.subr.mxu0 0.0
    %2017 = vmatpush1.msra.mxu0 0.0
    %2018 = vmatprep.subr.mxu0 0.0
    %2019 = vmatpush1.msra.mxu0 0.0
    %2020 = vmatprep.subr.mxu0 0.0
    %2021 = vmatpush1.msra.mxu0 0.0
    %2022 = vmatprep.subr.mxu0 0.0
    %2023 = vmatpush1.msra.mxu0 0.0
    %2024 = vmatprep.subr.mxu0 0.0
    %2025 = vmatpush1.msra.mxu0 0.0
    %2026 = vmatprep.subr.mxu0 0.0
    %2027 = vmatpush1.msra.mxu0 0.0
    %2028 = vmatprep.subr.mxu0 0.0
    %2029 = vmatpush1.msra.mxu0 0.0
    %2030 = vmatprep.subr.mxu0 0.0
    %2031 = vmatpush1.msra.mxu0 0.0
    %2032 = vmatprep.subr.mxu0 0.0
    %2033 = vmatpush1.msra.mxu0 0.0
    %2034 = vmatprep.subr.mxu0 0.0
    %2035 = vmatpush1.msra.mxu0 0.0
    %2036 = vmatprep.subr.mxu0 0.0
    %2037 = vmatpush1.msra.mxu0 0.0
    %2038 = vmatprep.subr.mxu0 0.0
    %2039 = vmatpush1.msra.mxu0 %v1282
    %2040 = vmatprep.subr.mxu0 0.0
    %2041 = vmatpush1.msra.mxu0 %v1281
    %2042 = vmatprep.subr.mxu0 0.0
    %2043 = vmatpush1.msra.mxu0 %v1280
    %2044 = vmatprep.subr.mxu0 0.0
    %2045 = vmatpush1.msra.mxu0 %v1279
    %2046 = vmatprep.subr.mxu0 0.0
    %2047 = vmatpush2.msra.mxu0 0.0
    %2048 = vmatprep.subr.mxu0 0.0
    %2049 = vmatpush2.msra.mxu0 0.0
    %2050 = vmatprep.subr.mxu0 0.0
    %2051 = vmatpush2.msra.mxu0 0.0
    %2052 = vmatprep.subr.mxu0 0.0
    %2053 = vmatpush2.msra.mxu0 0.0
    %2054 = vmatprep.subr.mxu0 0.0
    %2055 = vmatpush2.msra.mxu0 0.0
    %2056 = vmatprep.subr.mxu0 0.0
    %2057 = vmatpush2.msra.mxu0 0.0
    %2058 = vmatprep.subr.mxu0 0.0
    %2059 = vmatpush2.msra.mxu0 0.0
    %2060 = vmatprep.subr.mxu0 0.0
    %2061 = vmatpush2.msra.mxu0 0.0
    %2062 = vmatprep.subr.mxu0 0.0
    %2063 = vmatpush2.msra.mxu0 0.0
    %2064 = vmatprep.subr.mxu0 0.0
    %2065 = vmatpush2.msra.mxu0 0.0
    %2066 = vmatprep.subr.mxu0 0.0
    %2067 = vmatpush2.msra.mxu0 0.0
    %2068 = vmatprep.subr.mxu0 0.0
    %2069 = vmatpush2.msra.mxu0 0.0
    %2070 = vmatprep.subr.mxu0 0.0
    %2071 = vmatpush2.msra.mxu0 0.0
    %2072 = vmatprep.subr.mxu0 0.0
    %2073 = vmatpush2.msra.mxu0 0.0
    %2074 = vmatprep.subr.mxu0 0.0
    %2075 = vmatpush2.msra.mxu0 0.0
    %2076 = vmatprep.subr.mxu0 0.0
    %2077 = vmatpush2.msra.mxu0 0.0
    %2078 = vmatprep.mubr.f32.mxu0 0.0
    %2079 = vmatmul.mubr.f32.gmra.mxu0 %v2012
    %v2080 = vpop.f32.mrf.mxu0
    %v2081 = vadd.f32 0.0, %v2080
    %v2082 = vpop.f32.mrf.mxu0
    %2083 = vdwg.mxu0
    %v2084 = vadd.f32 %v1276, %v2081
    %v2085 = vxor.u32 %v2084, 2147483648
    %v2086 = vmul.f32 %v2085, 1.442695
    %v2087 = vpow.pop %v2086
    %v2088 = vadd.f32 %v2087, 1.0
    %v2089 = vrcp.pop %v2088
    %v2090 = vmul.f32 1.0, %v2089
    %v2091 = vadd.f32 %v2081, %v1372
    %2093 = vrot.lane.b32.xlu0 %v2091, 64
    %v2094 = vpop.permute.xlu0 %2093
    %v2096 = vmul.f32 %v2090, %v2094
    %2098 = vrot.lane.b32.xlu0 %v2096, 64
    %v2099 = vpop.permute.xlu0 %2098
    %v2101 = vadd.f32 %v1276, %v2099
    %v2102 = vtanh.pop %v2101
    %v2103 = vsub.f32 1.0, %v2090
    %2105 = vrot.lane.b32.xlu0 %v2102, 96
    %v2106 = vpop.permute.xlu0 %2105
    %v2108 = vmul.f32 %v2103, %v2106
    %v2109 = vmul.f32 %v2090, %v2008
    %v2110 = vadd.f32 %v2108, %v2109
    %2112 = vrot.lane.b32.xlu0 %v2110, 96
    %v2113 = vpop.permute.xlu0 %2112
    %s2115 = scalar_lea.vmem [#allocation16], 8
    %2116 = vst.msk [vmem:[%s2115] sm:$0xff] %vm290, %v2113
    %v2117 = vmax.f32 %v2110, 0.0
    %v2118 = vld [vmem:[%s10] sm:$0xff]
    %v2119 = vld [vmem:[%s10 + $0x8] sm:$0xff]
    %v2120 = vld [vmem:[%s10 + $0x10] sm:$0xff]
    %v2121 = vld [vmem:[%s10 + $0x18] sm:$0xff]
    %v2122 = vld [vmem:[%s11] sm:$0x1]
    %v2124 = vlaneseq
    %v2125 = vshrl.u32 %v2124, 7
    %v2126 = vsub.s32 0, %v2125
    %v2127 = vrot.slane %v2122, %v2126
    %2130 = vrot.lane.b32.xlu0 %v2117, 96
    %v2131 = vpop.permute.xlu0 %2130
    %v2132 = vsel %vm290, %v2131, 0
    %2134 = vmatprep.subr.mxu0 0.0
    %2135 = vmatpush1.msra.mxu0 0.0
    %2136 = vmatprep.subr.mxu0 0.0
    %2137 = vmatpush1.msra.mxu0 0.0
    %2138 = vmatprep.subr.mxu0 0.0
    %2139 = vmatpush1.msra.mxu0 0.0
    %2140 = vmatprep.subr.mxu0 0.0
    %2141 = vmatpush1.msra.mxu0 0.0
    %2142 = vmatprep.subr.mxu0 0.0
    %2143 = vmatpush1.msra.mxu0 0.0
    %2144 = vmatprep.subr.mxu0 0.0
    %2145 = vmatpush1.msra.mxu0 0.0
    %2146 = vmatprep.subr.mxu0 0.0
    %2147 = vmatpush1.msra.mxu0 0.0
    %2148 = vmatprep.subr.mxu0 0.0
    %2149 = vmatpush1.msra.mxu0 0.0
    %2150 = vmatprep.subr.mxu0 0.0
    %2151 = vmatpush1.msra.mxu0 0.0
    %2152 = vmatprep.subr.mxu0 0.0
    %2153 = vmatpush1.msra.mxu0 0.0
    %2154 = vmatprep.subr.mxu0 0.0
    %2155 = vmatpush1.msra.mxu0 0.0
    %2156 = vmatprep.subr.mxu0 0.0
    %2157 = vmatpush1.msra.mxu0 0.0
    %2158 = vmatprep.subr.mxu0 0.0
    %2159 = vmatpush1.msra.mxu0 %v2121
    %2160 = vmatprep.subr.mxu0 0.0
    %2161 = vmatpush1.msra.mxu0 %v2120
    %2162 = vmatprep.subr.mxu0 0.0
    %2163 = vmatpush1.msra.mxu0 %v2119
    %2164 = vmatprep.subr.mxu0 0.0
    %2165 = vmatpush1.msra.mxu0 %v2118
    %2166 = vmatprep.subr.mxu0 0.0
    %2167 = vmatpush2.msra.mxu0 0.0
    %2168 = vmatprep.subr.mxu0 0.0
    %2169 = vmatpush2.msra.mxu0 0.0
    %2170 = vmatprep.subr.mxu0 0.0
    %2171 = vmatpush2.msra.mxu0 0.0
    %2172 = vmatprep.subr.mxu0 0.0
    %2173 = vmatpush2.msra.mxu0 0.0
    %2174 = vmatprep.subr.mxu0 0.0
    %2175 = vmatpush2.msra.mxu0 0.0
    %2176 = vmatprep.subr.mxu0 0.0
    %2177 = vmatpush2.msra.mxu0 0.0
    %2178 = vmatprep.subr.mxu0 0.0
    %2179 = vmatpush2.msra.mxu0 0.0
    %2180 = vmatprep.subr.mxu0 0.0
    %2181 = vmatpush2.msra.mxu0 0.0
    %2182 = vmatprep.subr.mxu0 0.0
    %2183 = vmatpush2.msra.mxu0 0.0
    %2184 = vmatprep.subr.mxu0 0.0
    %2185 = vmatpush2.msra.mxu0 0.0
    %2186 = vmatprep.subr.mxu0 0.0
    %2187 = vmatpush2.msra.mxu0 0.0
    %2188 = vmatprep.subr.mxu0 0.0
    %2189 = vmatpush2.msra.mxu0 0.0
    %2190 = vmatprep.subr.mxu0 0.0
    %2191 = vmatpush2.msra.mxu0 0.0
    %2192 = vmatprep.subr.mxu0 0.0
    %2193 = vmatpush2.msra.mxu0 0.0
    %2194 = vmatprep.subr.mxu0 0.0
    %2195 = vmatpush2.msra.mxu0 0.0
    %2196 = vmatprep.subr.mxu0 0.0
    %2197 = vmatpush2.msra.mxu0 0.0
    %2198 = vmatprep.mubr.f32.mxu0 0.0
    %2199 = vmatmul.mubr.f32.gmra.mxu0 %v2132
    %v2200 = vpop.f32.mrf.mxu0
    %v2201 = vadd.f32 %v2127, %v2200
    %v2202 = vpop.f32.mrf.mxu0
    %2203 = vdwg.mxu0
    %2204 = vst [vmem:[#allocation15] sm:$0xff] %v2201
    // Predicated region
    $region78: #{tpu_custom_call.1} parent=1 // pred_check
      _
    $region79: #{tpu_custom_call.1} parent=1 // pred_check_branch
      %2206 = sbr.rel (0) target = $region81
    $region80: #{tpu_custom_call.1} parent=1 // pred_region
      %s2208 = ssub.s32 128, 128
      %2209 = vsyncadd [#allocation5], %s2208
      %s2211 = sshll.u32 [#allocation15], 4
      %s2212 = int_to_ptr.vmem [resolvable:$true] %s2211
      %2214 = dma.vmem_to_hbm [thread:$0]  %s2212, 128, %s12, [#allocation5]
    $region81: #{tpu_custom_call.1} parent=1 // pred_fallthru
      _
    // Predicated region
    $region82: #{tpu_custom_call.1} parent=1 // pred_check
      _
    $region83: #{tpu_custom_call.1} parent=1 // pred_check_branch
      %2216 = sbr.rel (0) target = $region85
    $region84: #{tpu_custom_call.1} parent=1 // pred_region
      %s2218 = ssub.s32 256, 256
      %2219 = vsyncadd [#allocation17], %s2218
      %s2220 = sshll.u32 [#allocation16], 4
      %s2221 = int_to_ptr.vmem [resolvable:$true] %s2220
      %2226 = dma.vmem_to_hbm [thread:$0]  %s2221, 256, %s13, [#allocation17], 128, 128, 8
    $region85: #{tpu_custom_call.1} parent=1 // pred_fallthru
      _
    // Predicated region
    $region86: #{tpu_custom_call.1} parent=1 // pred_check
      _
    $region87: #{tpu_custom_call.1} parent=1 // pred_check_branch
      %2228 = sbr.rel (0) target = $region89
    $region88: #{tpu_custom_call.1} parent=1 // pred_region
      %2229 = dma.done [#allocation5], 128
    $region89: #{tpu_custom_call.1} parent=1 // pred_fallthru
      _
    // Predicated region
    $region90: #{tpu_custom_call.1} parent=1 // pred_check
      _
    $region91: #{tpu_custom_call.1} parent=1 // pred_check_branch
      %2231 = sbr.rel (0) target = $region93
    $region92: #{tpu_custom_call.1} parent=1 // pred_region
      %2232 = dma.done [#allocation17], 256
    $region93: #{tpu_custom_call.1} parent=1 // pred_fallthru
      _
    %2233 = vsyncpa [#allocation4], 1
    %2234 = vsyncpa [#allocation7], 1
    %2235 = vsyncpa [#allocation10], 1
    %2236 = vsyncpa [#allocation13], 1
    %2237 = vsyncpa [#allocation5], 1
    %2238 = vsyncpa [#allocation17], 1

</llo_original>
